<compile_context>
chip_gen: v5e
topology: v5e:2x2
jax: 0.10.0
libtpu: 0.0.40
codegen_flags: <defaults>
</compile_context>

<pallas_src>
import functools

import jax
import jax.numpy as jnp
from jax import lax
from jax.experimental import pallas as pl
from jax.experimental.pallas import tpu as pltpu

BN_EPS = 1e-5

# Packed-vector row order (biases, BN gamma/beta).  First 13 rows have width
# `hidden`, last 4 rows have width `z`.
VEC_NAMES = [
    "b1a", "g1", "be1", "b1b", "bfc1",
    "b2a", "g2", "be2", "b2b", "bfc2",
    "b3a", "g3", "be3",
    "b3b", "bfc3", "bfc4", "bfc5",
]
VEC_IDX = {name: i for i, name in enumerate(VEC_NAMES)}
Z_WIDTH_VECS = ("b3b", "bfc3", "bfc4", "bfc5")

WEIGHT_ORDER = ["w1a", "w1b", "wfc1", "w2a", "w2b", "wfc2",
                "w3a", "w3b", "wfc3", "wfc4", "wfc5"]


def encoder_gin_kernel(x_ref, aa_ref, vec_ref,
                       w1a_ref, w1b_ref, wfc1_ref,
                       w2a_ref, w2b_ref, wfc2_ref,
                       w3a_ref, w3b_ref, wfc3_ref,
                       w4_ref, w5_ref,
                       zg_ref, h_ref,
                       *, n_nodes, hidden, z_dim):
    f32 = jnp.float32
    relu = lambda t: jnp.maximum(t, 0.0)
    inv_n = 1.0 / n_nodes

    def vec(name):
        i = VEC_IDX[name]
        w = z_dim if name in Z_WIDTH_VECS else hidden
        return vec_ref[i:i + 1, :w]                       # (1, w) packed param row

    AA = aa_ref[...]                                       # (2N, N) = [[A+I],[A^T+I]]

    def bn_relu(u, g, be):
        # nn.BatchNorm1d training mode: biased batch stats, raw-moment form so the
        # two axis-0 reductions are independent.
        mu = jnp.sum(u, axis=0, keepdims=True) * inv_n
        ex2 = jnp.sum(u * u, axis=0, keepdims=True) * inv_n
        var = ex2 - mu * mu
        return relu((u - mu) * lax.rsqrt(var + BN_EPS) * g + be)

    def gin_layer(h, wa_ref, ba, g, be, wb_ref, bb, wfc_ref, bfc, final_relu):
        # Both edge directions in one matmul; +I (GIN self term) already folded in.
        agg = jnp.dot(AA, h, preferred_element_type=f32)               # (2N, Fin)
        t = jnp.dot(agg, wa_ref[...], preferred_element_type=f32) + ba  # (2N, H)
        # BatchNorm statistics per branch (each N-row half independently).
        t = jnp.concatenate(
            [bn_relu(t[:n_nodes], g, be), bn_relu(t[n_nodes:], g, be)], axis=0)
        t = jnp.dot(t, wb_ref[...], preferred_element_type=f32) + bb    # (2N, Fo)
        if final_relu:
            t = relu(t)
        # fcX(cat(h_fwd, h_rev)) as a single matmul with the full fc weight.
        hc = jnp.concatenate([t[:n_nodes], t[n_nodes:]], axis=1)        # (N, 2Fo)
        return relu(jnp.dot(hc, wfc_ref[...], preferred_element_type=f32) + bfc)

    x = x_ref[...]

    h1 = gin_layer(x, w1a_ref, vec("b1a"), vec("g1"), vec("be1"),
                   w1b_ref, vec("b1b"), wfc1_ref, vec("bfc1"), True)
    h2 = gin_layer(h1, w2a_ref, vec("b2a"), vec("g2"), vec("be2"),
                   w2b_ref, vec("b2b"), wfc2_ref, vec("bfc2"), True)
    # conv3's MLP has no final ReLU.
    h3 = gin_layer(h2, w3a_ref, vec("b3a"), vec("g3"), vec("be3"),
                   w3b_ref, vec("b3b"), wfc3_ref, vec("bfc3"), False)

    # global_add_pool (batch=None -> single graph) + fc4 / fc5, each as ONE matmul
    # over the lane-concatenated features.
    hcat = jnp.concatenate([h1, h2, h3], axis=1)            # (N, 2*hidden + z)
    pooled = jnp.sum(hcat, axis=0, keepdims=True)           # (1, 2*hidden + z)
    zg_ref[...] = (jnp.dot(relu(pooled), w4_ref[...],
                           preferred_element_type=f32) + vec("bfc4"))
    h_ref[...] = (jnp.dot(hcat, w5_ref[...],
                          preferred_element_type=f32) + vec("bfc5"))


def encoder_gin_forward(x, A, params):
    N = x.shape[0]
    hidden = params["w1a"].shape[1]
    z_dim = params["bfc4"].shape[-1]

    eye = jnp.eye(N, dtype=jnp.float32)
    # Stack both edge directions and fold the GIN self-term (+I) into the matmul.
    AA = jnp.concatenate([A + eye, A.T + eye], axis=0)      # (2N, N)

    # Pack all tiny (1, hidden)/(1, z) params into one array -> one DMA.
    vec_w = max(hidden, z_dim)
    rows = []
    for name in VEC_NAMES:
        v = params[name].reshape(1, -1).astype(jnp.float32)
        rows.append(jnp.pad(v, ((0, 0), (0, vec_w - v.shape[1]))))
    vecs = jnp.concatenate(rows, axis=0)                    # (17, vec_w)

    inputs = [x, AA, vecs] + [params[k] for k in WEIGHT_ORDER]
    vmem = pl.BlockSpec(memory_space=pltpu.MemorySpace.VMEM)
    kernel = functools.partial(encoder_gin_kernel,
                               n_nodes=N, hidden=hidden, z_dim=z_dim)
    out_shape = (jax.ShapeDtypeStruct((1, z_dim), jnp.float32),
                 jax.ShapeDtypeStruct((N, z_dim), jnp.float32))
    return pl.pallas_call(
        kernel,
        out_shape=out_shape,
        in_specs=[vmem] * len(inputs),
        out_specs=(vmem, vmem),
    )(*inputs)


def init_params(key, in_features, hidden, z):
    keys = iter(jax.random.split(key, 16))

    def W(shape):  # torch: nn.init.normal_(weight, 0, 0.01); stored as [in, out]
        return 0.01 * jax.random.normal(next(keys), shape, jnp.float32)

    def b(dim):
        return jnp.zeros((1, dim), jnp.float32)

    def ones(dim):
        return jnp.ones((1, dim), jnp.float32)

    p = {}
    # conv1 MLP: Linear(in, hid) -> BN(hid) -> ReLU -> Linear(hid, hid) -> ReLU
    p["w1a"], p["b1a"] = W((in_features, hidden)), b(hidden)
    p["g1"], p["be1"] = ones(hidden), b(hidden)
    p["w1b"], p["b1b"] = W((hidden, hidden)), b(hidden)
    p["wfc1"], p["bfc1"] = W((2 * hidden, hidden)), b(hidden)
    # conv2 MLP
    p["w2a"], p["b2a"] = W((hidden, hidden)), b(hidden)
    p["g2"], p["be2"] = ones(hidden), b(hidden)
    p["w2b"], p["b2b"] = W((hidden, hidden)), b(hidden)
    p["wfc2"], p["bfc2"] = W((2 * hidden, hidden)), b(hidden)
    # conv3 MLP: Linear(hid, hid) -> BN -> ReLU -> Linear(hid, z)
    p["w3a"], p["b3a"] = W((hidden, hidden)), b(hidden)
    p["g3"], p["be3"] = ones(hidden), b(hidden)
    p["w3b"], p["b3b"] = W((hidden, z)), b(z)
    p["wfc3"], p["bfc3"] = W((2 * z, z)), b(z)
    # fc4 / fc5: Linear(z + 2*hidden, z)
    p["wfc4"], p["bfc4"] = W((2 * hidden + z, z)), b(z)
    p["wfc5"], p["bfc5"] = W((2 * hidden + z, z)), b(z)
    return p


def reference_forward(x, A, p):
    """Pure-JAX reference (same math as the PyTorch module in training mode)."""
    relu = jax.nn.relu
    At = A.T

    def bn(t, g, be):
        mu = t.mean(0, keepdims=True)
        var = ((t - mu) ** 2).mean(0, keepdims=True)
        return (t - mu) / jnp.sqrt(var + BN_EPS) * g + be

    def gin(h, adj, wa, ba, g, be, wb, bb, final_relu):
        t = h + adj @ h
        t = relu(bn(t @ wa + ba, g, be))
        t = t @ wb + bb
        return relu(t) if final_relu else t

    h11 = gin(x, A, p["w1a"], p["b1a"], p["g1"], p["be1"], p["w1b"], p["b1b"], True)
    h12 = gin(x, At, p["w1a"], p["b1a"], p["g1"], p["be1"], p["w1b"], p["b1b"], True)
    h1 = relu(jnp.concatenate([h11, h12], axis=1) @ p["wfc1"] + p["bfc1"])
    h21 = gin(h1, A, p["w2a"], p["b2a"], p["g2"], p["be2"], p["w2b"], p["b2b"], True)
    h22 = gin(h1, At, p["w2a"], p["b2a"], p["g2"], p["be2"], p["w2b"], p["b2b"], True)
    h2 = relu(jnp.concatenate([h21, h22], axis=1) @ p["wfc2"] + p["bfc2"])
    h31 = gin(h2, A, p["w3a"], p["b3a"], p["g3"], p["be3"], p["w3b"], p["b3b"], False)
    h32 = gin(h2, At, p["w3a"], p["b3a"], p["g3"], p["be3"], p["w3b"], p["b3b"], False)
    h3 = relu(jnp.concatenate([h31, h32], axis=1) @ p["wfc3"] + p["bfc3"])
    h1g = h1.sum(0, keepdims=True)
    h2g = h2.sum(0, keepdims=True)
    h3g = h3.sum(0, keepdims=True)
    zg = relu(jnp.concatenate([h1g, h2g, h3g], axis=1)) @ p["wfc4"] + p["bfc4"]
    h = jnp.concatenate([h1, h2, h3], axis=1) @ p["wfc5"] + p["bfc5"]
    return zg, h


if __name__ == "__main__":
    N, E = 16, 48                         # nodes, edges
    in_features, hidden, z_dim = 8, 32, 16

    key = jax.random.PRNGKey(0)
    k_src, k_dst, k_x, k_param = jax.random.split(key, 4)

    src = jax.random.randint(k_src, (E,), 0, N)   # edge_index row 0 (source j)
    dst = jax.random.randint(k_dst, (E,), 0, N)   # edge_index row 1 (target i)
    # A[i, j] = number of edges (j -> i); GIN sum-aggregation = A @ x.
    # The reverse-direction (edge_index_t) aggregation uses A.T (built in wrapper).
    A = jnp.zeros((N, N), jnp.float32).at[dst, src].add(1.0)
    x = jax.random.normal(k_x, (N, in_features), jnp.float32)

    params = init_params(k_param, in_features, hidden, z_dim)

    zg, h = encoder_gin_forward(x, A, params)
    jax.block_until_ready((zg, h))

    zg_ref, h_ref = reference_forward(x, A, params)
    assert zg.shape == (1, z_dim) and h.shape == (N, z_dim)
    assert jnp.allclose(zg, zg_ref, rtol=1e-4, atol=1e-5), "z_g mismatch vs reference"
    assert jnp.allclose(h, h_ref, rtol=1e-4, atol=1e-5), "h mismatch vs reference"

    print("KERNEL_OK")
</pallas_src>

<mosaic_0001>
module attributes {stable_mosaic.version = 11 : i64} {
  func.func @encoder_gin_kernel(%arg0: memref<16x8xf32, #tpu.memory_space<vmem>>, %arg1: memref<32x16xf32, #tpu.memory_space<vmem>>, %arg2: memref<17x32xf32, #tpu.memory_space<vmem>>, %arg3: memref<8x32xf32, #tpu.memory_space<vmem>>, %arg4: memref<32x32xf32, #tpu.memory_space<vmem>>, %arg5: memref<64x32xf32, #tpu.memory_space<vmem>>, %arg6: memref<32x32xf32, #tpu.memory_space<vmem>>, %arg7: memref<32x32xf32, #tpu.memory_space<vmem>>, %arg8: memref<64x32xf32, #tpu.memory_space<vmem>>, %arg9: memref<32x32xf32, #tpu.memory_space<vmem>>, %arg10: memref<32x16xf32, #tpu.memory_space<vmem>>, %arg11: memref<32x16xf32, #tpu.memory_space<vmem>>, %arg12: memref<80x16xf32, #tpu.memory_space<vmem>>, %arg13: memref<80x16xf32, #tpu.memory_space<vmem>>, %arg14: memref<1x16xf32, #tpu.memory_space<vmem>>, %arg15: memref<16x16xf32, #tpu.memory_space<vmem>>) attributes {dimension_semantics = [], scalar_prefetch = 0 : i64, scratch_operands = 0 : i64, tpu.core_type = #tpu.core_type<tc>} {
    %c0 = arith.constant 0 : index
    %c0_0 = arith.constant 0 : index
    %0 = vector.load %arg1[%c0, %c0_0] : memref<32x16xf32, #tpu.memory_space<vmem>>, vector<32x16xf32>
    %c0_1 = arith.constant 0 : index
    %c0_2 = arith.constant 0 : index
    %1 = vector.load %arg0[%c0_1, %c0_2] : memref<16x8xf32, #tpu.memory_space<vmem>>, vector<16x8xf32>
    %c0_3 = arith.constant 0 : index
    %c0_4 = arith.constant 0 : index
    %2 = vector.load %arg2[%c0_3, %c0_4] : memref<17x32xf32, #tpu.memory_space<vmem>>, vector<1x32xf32>
    %c1 = arith.constant 1 : index
    %c0_5 = arith.constant 0 : index
    %3 = vector.load %arg2[%c1, %c0_5] : memref<17x32xf32, #tpu.memory_space<vmem>>, vector<1x32xf32>
    %c2 = arith.constant 2 : index
    %c0_6 = arith.constant 0 : index
    %4 = vector.load %arg2[%c2, %c0_6] : memref<17x32xf32, #tpu.memory_space<vmem>>, vector<1x32xf32>
    %c3 = arith.constant 3 : index
    %c0_7 = arith.constant 0 : index
    %5 = vector.load %arg2[%c3, %c0_7] : memref<17x32xf32, #tpu.memory_space<vmem>>, vector<1x32xf32>
    %c4 = arith.constant 4 : index
    %c0_8 = arith.constant 0 : index
    %6 = vector.load %arg2[%c4, %c0_8] : memref<17x32xf32, #tpu.memory_space<vmem>>, vector<1x32xf32>
    %cst = arith.constant dense<0.000000e+00> : vector<32x8xf32>
    %7 = tpu.matmul %0, %1, %cst {dimension_numbers = #tpu.dot_dimension_numbers<[1], [0], [0], [1], [0, 0, 1, 1], [], []>} : vector<32x16xf32>, vector<16x8xf32>, vector<32x8xf32> -> vector<32x8xf32>
    %c0_9 = arith.constant 0 : index
    %c0_10 = arith.constant 0 : index
    %8 = vector.load %arg3[%c0_9, %c0_10] : memref<8x32xf32, #tpu.memory_space<vmem>>, vector<8x32xf32>
    %cst_11 = arith.constant dense<0.000000e+00> : vector<32x32xf32>
    %9 = tpu.matmul %7, %8, %cst_11 {dimension_numbers = #tpu.dot_dimension_numbers<[1], [0], [0], [1], [0, 0, 1, 1], [], []>} : vector<32x8xf32>, vector<8x32xf32>, vector<32x32xf32> -> vector<32x32xf32>
    %10 = vector.broadcast %2 : vector<1x32xf32> to vector<32x32xf32>
    %11 = arith.addf %9, %10 : vector<32x32xf32>
    %12 = vector.extract_strided_slice %11 {offsets = [0, 0], sizes = [16, 32], strides = [1, 1]} : vector<32x32xf32> to vector<16x32xf32>
    %cst_12 = arith.constant dense<0.000000e+00> : vector<32xf32>
    %13 = vector.multi_reduction <add>, %12, %cst_12 [0] : vector<16x32xf32> to vector<32xf32>
    %14 = vector.shape_cast %13 : vector<32xf32> to vector<1x32xf32>
    %cst_13 = arith.constant 6.250000e-02 : f32
    %15 = vector.broadcast %cst_13 : f32 to vector<1x32xf32>
    %16 = arith.mulf %14, %15 : vector<1x32xf32>
    %17 = arith.mulf %12, %12 : vector<16x32xf32>
    %cst_14 = arith.constant dense<0.000000e+00> : vector<32xf32>
    %18 = vector.multi_reduction <add>, %17, %cst_14 [0] : vector<16x32xf32> to vector<32xf32>
    %19 = vector.shape_cast %18 : vector<32xf32> to vector<1x32xf32>
    %cst_15 = arith.constant 6.250000e-02 : f32
    %20 = vector.broadcast %cst_15 : f32 to vector<1x32xf32>
    %21 = arith.mulf %19, %20 : vector<1x32xf32>
    %22 = arith.mulf %16, %16 : vector<1x32xf32>
    %23 = arith.subf %21, %22 : vector<1x32xf32>
    %24 = vector.broadcast %16 : vector<1x32xf32> to vector<16x32xf32>
    %25 = arith.subf %12, %24 : vector<16x32xf32>
    %cst_16 = arith.constant 9.99999974E-6 : f32
    %26 = vector.broadcast %cst_16 : f32 to vector<1x32xf32>
    %27 = arith.addf %23, %26 : vector<1x32xf32>
    %28 = math.rsqrt %27 : vector<1x32xf32>
    %29 = vector.broadcast %28 : vector<1x32xf32> to vector<16x32xf32>
    %30 = arith.mulf %25, %29 : vector<16x32xf32>
    %31 = vector.broadcast %3 : vector<1x32xf32> to vector<16x32xf32>
    %32 = arith.mulf %30, %31 : vector<16x32xf32>
    %33 = vector.broadcast %4 : vector<1x32xf32> to vector<16x32xf32>
    %34 = arith.addf %32, %33 : vector<16x32xf32>
    %cst_17 = arith.constant 0.000000e+00 : f32
    %35 = vector.broadcast %cst_17 : f32 to vector<16x32xf32>
    %36 = arith.maximumf %34, %35 : vector<16x32xf32>
    %37 = vector.extract_strided_slice %11 {offsets = [16, 0], sizes = [16, 32], strides = [1, 1]} : vector<32x32xf32> to vector<16x32xf32>
    %cst_18 = arith.constant dense<0.000000e+00> : vector<32xf32>
    %38 = vector.multi_reduction <add>, %37, %cst_18 [0] : vector<16x32xf32> to vector<32xf32>
    %39 = vector.shape_cast %38 : vector<32xf32> to vector<1x32xf32>
    %cst_19 = arith.constant 6.250000e-02 : f32
    %40 = vector.broadcast %cst_19 : f32 to vector<1x32xf32>
    %41 = arith.mulf %39, %40 : vector<1x32xf32>
    %42 = arith.mulf %37, %37 : vector<16x32xf32>
    %cst_20 = arith.constant dense<0.000000e+00> : vector<32xf32>
    %43 = vector.multi_reduction <add>, %42, %cst_20 [0] : vector<16x32xf32> to vector<32xf32>
    %44 = vector.shape_cast %43 : vector<32xf32> to vector<1x32xf32>
    %cst_21 = arith.constant 6.250000e-02 : f32
    %45 = vector.broadcast %cst_21 : f32 to vector<1x32xf32>
    %46 = arith.mulf %44, %45 : vector<1x32xf32>
    %47 = arith.mulf %41, %41 : vector<1x32xf32>
    %48 = arith.subf %46, %47 : vector<1x32xf32>
    %49 = vector.broadcast %41 : vector<1x32xf32> to vector<16x32xf32>
    %50 = arith.subf %37, %49 : vector<16x32xf32>
    %cst_22 = arith.constant 9.99999974E-6 : f32
    %51 = vector.broadcast %cst_22 : f32 to vector<1x32xf32>
    %52 = arith.addf %48, %51 : vector<1x32xf32>
    %53 = math.rsqrt %52 : vector<1x32xf32>
    %54 = vector.broadcast %53 : vector<1x32xf32> to vector<16x32xf32>
    %55 = arith.mulf %50, %54 : vector<16x32xf32>
    %56 = vector.broadcast %3 : vector<1x32xf32> to vector<16x32xf32>
    %57 = arith.mulf %55, %56 : vector<16x32xf32>
    %58 = vector.broadcast %4 : vector<1x32xf32> to vector<16x32xf32>
    %59 = arith.addf %57, %58 : vector<16x32xf32>
    %cst_23 = arith.constant 0.000000e+00 : f32
    %60 = vector.broadcast %cst_23 : f32 to vector<16x32xf32>
    %61 = arith.maximumf %59, %60 : vector<16x32xf32>
    %62 = tpu.concatenate %36, %61 in 0 : vector<16x32xf32>, vector<16x32xf32> -> vector<32x32xf32>
    %c0_24 = arith.constant 0 : index
    %c0_25 = arith.constant 0 : index
    %63 = vector.load %arg4[%c0_24, %c0_25] : memref<32x32xf32, #tpu.memory_space<vmem>>, vector<32x32xf32>
    %cst_26 = arith.constant dense<0.000000e+00> : vector<32x32xf32>
    %64 = tpu.matmul %62, %63, %cst_26 {dimension_numbers = #tpu.dot_dimension_numbers<[1], [0], [0], [1], [0, 0, 1, 1], [], []>} : vector<32x32xf32>, vector<32x32xf32>, vector<32x32xf32> -> vector<32x32xf32>
    %65 = vector.broadcast %5 : vector<1x32xf32> to vector<32x32xf32>
    %66 = arith.addf %64, %65 : vector<32x32xf32>
    %cst_27 = arith.constant 0.000000e+00 : f32
    %67 = vector.broadcast %cst_27 : f32 to vector<32x32xf32>
    %68 = arith.maximumf %66, %67 : vector<32x32xf32>
    %69 = vector.extract_strided_slice %68 {offsets = [0, 0], sizes = [16, 32], strides = [1, 1]} : vector<32x32xf32> to vector<16x32xf32>
    %70 = vector.extract_strided_slice %68 {offsets = [16, 0], sizes = [16, 32], strides = [1, 1]} : vector<32x32xf32> to vector<16x32xf32>
    %71 = tpu.concatenate %69, %70 in 1 : vector<16x32xf32>, vector<16x32xf32> -> vector<16x64xf32>
    %c0_28 = arith.constant 0 : index
    %c0_29 = arith.constant 0 : index
    %72 = vector.load %arg5[%c0_28, %c0_29] : memref<64x32xf32, #tpu.memory_space<vmem>>, vector<64x32xf32>
    %cst_30 = arith.constant dense<0.000000e+00> : vector<16x32xf32>
    %73 = tpu.matmul %71, %72, %cst_30 {dimension_numbers = #tpu.dot_dimension_numbers<[1], [0], [0], [1], [0, 0, 1, 1], [], []>} : vector<16x64xf32>, vector<64x32xf32>, vector<16x32xf32> -> vector<16x32xf32>
    %74 = vector.broadcast %6 : vector<1x32xf32> to vector<16x32xf32>
    %75 = arith.addf %73, %74 : vector<16x32xf32>
    %cst_31 = arith.constant 0.000000e+00 : f32
    %76 = vector.broadcast %cst_31 : f32 to vector<16x32xf32>
    %77 = arith.maximumf %75, %76 : vector<16x32xf32>
    %c5 = arith.constant 5 : index
    %c0_32 = arith.constant 0 : index
    %78 = vector.load %arg2[%c5, %c0_32] : memref<17x32xf32, #tpu.memory_space<vmem>>, vector<1x32xf32>
    %c6 = arith.constant 6 : index
    %c0_33 = arith.constant 0 : index
    %79 = vector.load %arg2[%c6, %c0_33] : memref<17x32xf32, #tpu.memory_space<vmem>>, vector<1x32xf32>
    %c7 = arith.constant 7 : index
    %c0_34 = arith.constant 0 : index
    %80 = vector.load %arg2[%c7, %c0_34] : memref<17x32xf32, #tpu.memory_space<vmem>>, vector<1x32xf32>
    %c8 = arith.constant 8 : index
    %c0_35 = arith.constant 0 : index
    %81 = vector.load %arg2[%c8, %c0_35] : memref<17x32xf32, #tpu.memory_space<vmem>>, vector<1x32xf32>
    %c9 = arith.constant 9 : index
    %c0_36 = arith.constant 0 : index
    %82 = vector.load %arg2[%c9, %c0_36] : memref<17x32xf32, #tpu.memory_space<vmem>>, vector<1x32xf32>
    %cst_37 = arith.constant dense<0.000000e+00> : vector<32x32xf32>
    %83 = tpu.matmul %0, %77, %cst_37 {dimension_numbers = #tpu.dot_dimension_numbers<[1], [0], [0], [1], [0, 0, 1, 1], [], []>} : vector<32x16xf32>, vector<16x32xf32>, vector<32x32xf32> -> vector<32x32xf32>
    %c0_38 = arith.constant 0 : index
    %c0_39 = arith.constant 0 : index
    %84 = vector.load %arg6[%c0_38, %c0_39] : memref<32x32xf32, #tpu.memory_space<vmem>>, vector<32x32xf32>
    %cst_40 = arith.constant dense<0.000000e+00> : vector<32x32xf32>
    %85 = tpu.matmul %83, %84, %cst_40 {dimension_numbers = #tpu.dot_dimension_numbers<[1], [0], [0], [1], [0, 0, 1, 1], [], []>} : vector<32x32xf32>, vector<32x32xf32>, vector<32x32xf32> -> vector<32x32xf32>
    %86 = vector.broadcast %78 : vector<1x32xf32> to vector<32x32xf32>
    %87 = arith.addf %85, %86 : vector<32x32xf32>
    %88 = vector.extract_strided_slice %87 {offsets = [0, 0], sizes = [16, 32], strides = [1, 1]} : vector<32x32xf32> to vector<16x32xf32>
    %cst_41 = arith.constant dense<0.000000e+00> : vector<32xf32>
    %89 = vector.multi_reduction <add>, %88, %cst_41 [0] : vector<16x32xf32> to vector<32xf32>
    %90 = vector.shape_cast %89 : vector<32xf32> to vector<1x32xf32>
    %cst_42 = arith.constant 6.250000e-02 : f32
    %91 = vector.broadcast %cst_42 : f32 to vector<1x32xf32>
    %92 = arith.mulf %90, %91 : vector<1x32xf32>
    %93 = arith.mulf %88, %88 : vector<16x32xf32>
    %cst_43 = arith.constant dense<0.000000e+00> : vector<32xf32>
    %94 = vector.multi_reduction <add>, %93, %cst_43 [0] : vector<16x32xf32> to vector<32xf32>
    %95 = vector.shape_cast %94 : vector<32xf32> to vector<1x32xf32>
    %cst_44 = arith.constant 6.250000e-02 : f32
    %96 = vector.broadcast %cst_44 : f32 to vector<1x32xf32>
    %97 = arith.mulf %95, %96 : vector<1x32xf32>
    %98 = arith.mulf %92, %92 : vector<1x32xf32>
    %99 = arith.subf %97, %98 : vector<1x32xf32>
    %100 = vector.broadcast %92 : vector<1x32xf32> to vector<16x32xf32>
    %101 = arith.subf %88, %100 : vector<16x32xf32>
    %cst_45 = arith.constant 9.99999974E-6 : f32
    %102 = vector.broadcast %cst_45 : f32 to vector<1x32xf32>
    %103 = arith.addf %99, %102 : vector<1x32xf32>
    %104 = math.rsqrt %103 : vector<1x32xf32>
    %105 = vector.broadcast %104 : vector<1x32xf32> to vector<16x32xf32>
    %106 = arith.mulf %101, %105 : vector<16x32xf32>
    %107 = vector.broadcast %79 : vector<1x32xf32> to vector<16x32xf32>
    %108 = arith.mulf %106, %107 : vector<16x32xf32>
    %109 = vector.broadcast %80 : vector<1x32xf32> to vector<16x32xf32>
    %110 = arith.addf %108, %109 : vector<16x32xf32>
    %cst_46 = arith.constant 0.000000e+00 : f32
    %111 = vector.broadcast %cst_46 : f32 to vector<16x32xf32>
    %112 = arith.maximumf %110, %111 : vector<16x32xf32>
    %113 = vector.extract_strided_slice %87 {offsets = [16, 0], sizes = [16, 32], strides = [1, 1]} : vector<32x32xf32> to vector<16x32xf32>
    %cst_47 = arith.constant dense<0.000000e+00> : vector<32xf32>
    %114 = vector.multi_reduction <add>, %113, %cst_47 [0] : vector<16x32xf32> to vector<32xf32>
    %115 = vector.shape_cast %114 : vector<32xf32> to vector<1x32xf32>
    %cst_48 = arith.constant 6.250000e-02 : f32
    %116 = vector.broadcast %cst_48 : f32 to vector<1x32xf32>
    %117 = arith.mulf %115, %116 : vector<1x32xf32>
    %118 = arith.mulf %113, %113 : vector<16x32xf32>
    %cst_49 = arith.constant dense<0.000000e+00> : vector<32xf32>
    %119 = vector.multi_reduction <add>, %118, %cst_49 [0] : vector<16x32xf32> to vector<32xf32>
    %120 = vector.shape_cast %119 : vector<32xf32> to vector<1x32xf32>
    %cst_50 = arith.constant 6.250000e-02 : f32
    %121 = vector.broadcast %cst_50 : f32 to vector<1x32xf32>
    %122 = arith.mulf %120, %121 : vector<1x32xf32>
    %123 = arith.mulf %117, %117 : vector<1x32xf32>
    %124 = arith.subf %122, %123 : vector<1x32xf32>
    %125 = vector.broadcast %117 : vector<1x32xf32> to vector<16x32xf32>
    %126 = arith.subf %113, %125 : vector<16x32xf32>
    %cst_51 = arith.constant 9.99999974E-6 : f32
    %127 = vector.broadcast %cst_51 : f32 to vector<1x32xf32>
    %128 = arith.addf %124, %127 : vector<1x32xf32>
    %129 = math.rsqrt %128 : vector<1x32xf32>
    %130 = vector.broadcast %129 : vector<1x32xf32> to vector<16x32xf32>
    %131 = arith.mulf %126, %130 : vector<16x32xf32>
    %132 = vector.broadcast %79 : vector<1x32xf32> to vector<16x32xf32>
    %133 = arith.mulf %131, %132 : vector<16x32xf32>
    %134 = vector.broadcast %80 : vector<1x32xf32> to vector<16x32xf32>
    %135 = arith.addf %133, %134 : vector<16x32xf32>
    %cst_52 = arith.constant 0.000000e+00 : f32
    %136 = vector.broadcast %cst_52 : f32 to vector<16x32xf32>
    %137 = arith.maximumf %135, %136 : vector<16x32xf32>
    %138 = tpu.concatenate %112, %137 in 0 : vector<16x32xf32>, vector<16x32xf32> -> vector<32x32xf32>
    %c0_53 = arith.constant 0 : index
    %c0_54 = arith.constant 0 : index
    %139 = vector.load %arg7[%c0_53, %c0_54] : memref<32x32xf32, #tpu.memory_space<vmem>>, vector<32x32xf32>
    %cst_55 = arith.constant dense<0.000000e+00> : vector<32x32xf32>
    %140 = tpu.matmul %138, %139, %cst_55 {dimension_numbers = #tpu.dot_dimension_numbers<[1], [0], [0], [1], [0, 0, 1, 1], [], []>} : vector<32x32xf32>, vector<32x32xf32>, vector<32x32xf32> -> vector<32x32xf32>
    %141 = vector.broadcast %81 : vector<1x32xf32> to vector<32x32xf32>
    %142 = arith.addf %140, %141 : vector<32x32xf32>
    %cst_56 = arith.constant 0.000000e+00 : f32
    %143 = vector.broadcast %cst_56 : f32 to vector<32x32xf32>
    %144 = arith.maximumf %142, %143 : vector<32x32xf32>
    %145 = vector.extract_strided_slice %144 {offsets = [0, 0], sizes = [16, 32], strides = [1, 1]} : vector<32x32xf32> to vector<16x32xf32>
    %146 = vector.extract_strided_slice %144 {offsets = [16, 0], sizes = [16, 32], strides = [1, 1]} : vector<32x32xf32> to vector<16x32xf32>
    %147 = tpu.concatenate %145, %146 in 1 : vector<16x32xf32>, vector<16x32xf32> -> vector<16x64xf32>
    %c0_57 = arith.constant 0 : index
    %c0_58 = arith.constant 0 : index
    %148 = vector.load %arg8[%c0_57, %c0_58] : memref<64x32xf32, #tpu.memory_space<vmem>>, vector<64x32xf32>
    %cst_59 = arith.constant dense<0.000000e+00> : vector<16x32xf32>
    %149 = tpu.matmul %147, %148, %cst_59 {dimension_numbers = #tpu.dot_dimension_numbers<[1], [0], [0], [1], [0, 0, 1, 1], [], []>} : vector<16x64xf32>, vector<64x32xf32>, vector<16x32xf32> -> vector<16x32xf32>
    %150 = vector.broadcast %82 : vector<1x32xf32> to vector<16x32xf32>
    %151 = arith.addf %149, %150 : vector<16x32xf32>
    %cst_60 = arith.constant 0.000000e+00 : f32
    %152 = vector.broadcast %cst_60 : f32 to vector<16x32xf32>
    %153 = arith.maximumf %151, %152 : vector<16x32xf32>
    %c10 = arith.constant 10 : index
    %c0_61 = arith.constant 0 : index
    %154 = vector.load %arg2[%c10, %c0_61] : memref<17x32xf32, #tpu.memory_space<vmem>>, vector<1x32xf32>
    %c11 = arith.constant 11 : index
    %c0_62 = arith.constant 0 : index
    %155 = vector.load %arg2[%c11, %c0_62] : memref<17x32xf32, #tpu.memory_space<vmem>>, vector<1x32xf32>
    %c12 = arith.constant 12 : index
    %c0_63 = arith.constant 0 : index
    %156 = vector.load %arg2[%c12, %c0_63] : memref<17x32xf32, #tpu.memory_space<vmem>>, vector<1x32xf32>
    %c13 = arith.constant 13 : index
    %c0_64 = arith.constant 0 : index
    %157 = vector.load %arg2[%c13, %c0_64] : memref<17x32xf32, #tpu.memory_space<vmem>>, vector<1x16xf32>
    %c14 = arith.constant 14 : index
    %c0_65 = arith.constant 0 : index
    %158 = vector.load %arg2[%c14, %c0_65] : memref<17x32xf32, #tpu.memory_space<vmem>>, vector<1x16xf32>
    %cst_66 = arith.constant dense<0.000000e+00> : vector<32x32xf32>
    %159 = tpu.matmul %0, %153, %cst_66 {dimension_numbers = #tpu.dot_dimension_numbers<[1], [0], [0], [1], [0, 0, 1, 1], [], []>} : vector<32x16xf32>, vector<16x32xf32>, vector<32x32xf32> -> vector<32x32xf32>
    %c0_67 = arith.constant 0 : index
    %c0_68 = arith.constant 0 : index
    %160 = vector.load %arg9[%c0_67, %c0_68] : memref<32x32xf32, #tpu.memory_space<vmem>>, vector<32x32xf32>
    %cst_69 = arith.constant dense<0.000000e+00> : vector<32x32xf32>
    %161 = tpu.matmul %159, %160, %cst_69 {dimension_numbers = #tpu.dot_dimension_numbers<[1], [0], [0], [1], [0, 0, 1, 1], [], []>} : vector<32x32xf32>, vector<32x32xf32>, vector<32x32xf32> -> vector<32x32xf32>
    %162 = vector.broadcast %154 : vector<1x32xf32> to vector<32x32xf32>
    %163 = arith.addf %161, %162 : vector<32x32xf32>
    %164 = vector.extract_strided_slice %163 {offsets = [0, 0], sizes = [16, 32], strides = [1, 1]} : vector<32x32xf32> to vector<16x32xf32>
    %cst_70 = arith.constant dense<0.000000e+00> : vector<32xf32>
    %165 = vector.multi_reduction <add>, %164, %cst_70 [0] : vector<16x32xf32> to vector<32xf32>
    %166 = vector.shape_cast %165 : vector<32xf32> to vector<1x32xf32>
    %cst_71 = arith.constant 6.250000e-02 : f32
    %167 = vector.broadcast %cst_71 : f32 to vector<1x32xf32>
    %168 = arith.mulf %166, %167 : vector<1x32xf32>
    %169 = arith.mulf %164, %164 : vector<16x32xf32>
    %cst_72 = arith.constant dense<0.000000e+00> : vector<32xf32>
    %170 = vector.multi_reduction <add>, %169, %cst_72 [0] : vector<16x32xf32> to vector<32xf32>
    %171 = vector.shape_cast %170 : vector<32xf32> to vector<1x32xf32>
    %cst_73 = arith.constant 6.250000e-02 : f32
    %172 = vector.broadcast %cst_73 : f32 to vector<1x32xf32>
    %173 = arith.mulf %171, %172 : vector<1x32xf32>
    %174 = arith.mulf %168, %168 : vector<1x32xf32>
    %175 = arith.subf %173, %174 : vector<1x32xf32>
    %176 = vector.broadcast %168 : vector<1x32xf32> to vector<16x32xf32>
    %177 = arith.subf %164, %176 : vector<16x32xf32>
    %cst_74 = arith.constant 9.99999974E-6 : f32
    %178 = vector.broadcast %cst_74 : f32 to vector<1x32xf32>
    %179 = arith.addf %175, %178 : vector<1x32xf32>
    %180 = math.rsqrt %179 : vector<1x32xf32>
    %181 = vector.broadcast %180 : vector<1x32xf32> to vector<16x32xf32>
    %182 = arith.mulf %177, %181 : vector<16x32xf32>
    %183 = vector.broadcast %155 : vector<1x32xf32> to vector<16x32xf32>
    %184 = arith.mulf %182, %183 : vector<16x32xf32>
    %185 = vector.broadcast %156 : vector<1x32xf32> to vector<16x32xf32>
    %186 = arith.addf %184, %185 : vector<16x32xf32>
    %cst_75 = arith.constant 0.000000e+00 : f32
    %187 = vector.broadcast %cst_75 : f32 to vector<16x32xf32>
    %188 = arith.maximumf %186, %187 : vector<16x32xf32>
    %189 = vector.extract_strided_slice %163 {offsets = [16, 0], sizes = [16, 32], strides = [1, 1]} : vector<32x32xf32> to vector<16x32xf32>
    %cst_76 = arith.constant dense<0.000000e+00> : vector<32xf32>
    %190 = vector.multi_reduction <add>, %189, %cst_76 [0] : vector<16x32xf32> to vector<32xf32>
    %191 = vector.shape_cast %190 : vector<32xf32> to vector<1x32xf32>
    %cst_77 = arith.constant 6.250000e-02 : f32
    %192 = vector.broadcast %cst_77 : f32 to vector<1x32xf32>
    %193 = arith.mulf %191, %192 : vector<1x32xf32>
    %194 = arith.mulf %189, %189 : vector<16x32xf32>
    %cst_78 = arith.constant dense<0.000000e+00> : vector<32xf32>
    %195 = vector.multi_reduction <add>, %194, %cst_78 [0] : vector<16x32xf32> to vector<32xf32>
    %196 = vector.shape_cast %195 : vector<32xf32> to vector<1x32xf32>
    %cst_79 = arith.constant 6.250000e-02 : f32
    %197 = vector.broadcast %cst_79 : f32 to vector<1x32xf32>
    %198 = arith.mulf %196, %197 : vector<1x32xf32>
    %199 = arith.mulf %193, %193 : vector<1x32xf32>
    %200 = arith.subf %198, %199 : vector<1x32xf32>
    %201 = vector.broadcast %193 : vector<1x32xf32> to vector<16x32xf32>
    %202 = arith.subf %189, %201 : vector<16x32xf32>
    %cst_80 = arith.constant 9.99999974E-6 : f32
    %203 = vector.broadcast %cst_80 : f32 to vector<1x32xf32>
    %204 = arith.addf %200, %203 : vector<1x32xf32>
    %205 = math.rsqrt %204 : vector<1x32xf32>
    %206 = vector.broadcast %205 : vector<1x32xf32> to vector<16x32xf32>
    %207 = arith.mulf %202, %206 : vector<16x32xf32>
    %208 = vector.broadcast %155 : vector<1x32xf32> to vector<16x32xf32>
    %209 = arith.mulf %207, %208 : vector<16x32xf32>
    %210 = vector.broadcast %156 : vector<1x32xf32> to vector<16x32xf32>
    %211 = arith.addf %209, %210 : vector<16x32xf32>
    %cst_81 = arith.constant 0.000000e+00 : f32
    %212 = vector.broadcast %cst_81 : f32 to vector<16x32xf32>
    %213 = arith.maximumf %211, %212 : vector<16x32xf32>
    %214 = tpu.concatenate %188, %213 in 0 : vector<16x32xf32>, vector<16x32xf32> -> vector<32x32xf32>
    %c0_82 = arith.constant 0 : index
    %c0_83 = arith.constant 0 : index
    %215 = vector.load %arg10[%c0_82, %c0_83] : memref<32x16xf32, #tpu.memory_space<vmem>>, vector<32x16xf32>
    %cst_84 = arith.constant dense<0.000000e+00> : vector<32x16xf32>
    %216 = tpu.matmul %214, %215, %cst_84 {dimension_numbers = #tpu.dot_dimension_numbers<[1], [0], [0], [1], [0, 0, 1, 1], [], []>} : vector<32x32xf32>, vector<32x16xf32>, vector<32x16xf32> -> vector<32x16xf32>
    %217 = vector.broadcast %157 : vector<1x16xf32> to vector<32x16xf32>
    %218 = arith.addf %216, %217 : vector<32x16xf32>
    %219 = vector.extract_strided_slice %218 {offsets = [0, 0], sizes = [16, 16], strides = [1, 1]} : vector<32x16xf32> to vector<16x16xf32>
    %220 = vector.extract_strided_slice %218 {offsets = [16, 0], sizes = [16, 16], strides = [1, 1]} : vector<32x16xf32> to vector<16x16xf32>
    %221 = tpu.concatenate %219, %220 in 1 : vector<16x16xf32>, vector<16x16xf32> -> vector<16x32xf32>
    %c0_85 = arith.constant 0 : index
    %c0_86 = arith.constant 0 : index
    %222 = vector.load %arg11[%c0_85, %c0_86] : memref<32x16xf32, #tpu.memory_space<vmem>>, vector<32x16xf32>
    %cst_87 = arith.constant dense<0.000000e+00> : vector<16x16xf32>
    %223 = tpu.matmul %221, %222, %cst_87 {dimension_numbers = #tpu.dot_dimension_numbers<[1], [0], [0], [1], [0, 0, 1, 1], [], []>} : vector<16x32xf32>, vector<32x16xf32>, vector<16x16xf32> -> vector<16x16xf32>
    %224 = vector.broadcast %158 : vector<1x16xf32> to vector<16x16xf32>
    %225 = arith.addf %223, %224 : vector<16x16xf32>
    %cst_88 = arith.constant 0.000000e+00 : f32
    %226 = vector.broadcast %cst_88 : f32 to vector<16x16xf32>
    %227 = arith.maximumf %225, %226 : vector<16x16xf32>
    %228 = tpu.concatenate %77, %153, %227 in 1 : vector<16x32xf32>, vector<16x32xf32>, vector<16x16xf32> -> vector<16x80xf32>
    %cst_89 = arith.constant dense<0.000000e+00> : vector<80xf32>
    %229 = vector.multi_reduction <add>, %228, %cst_89 [0] : vector<16x80xf32> to vector<80xf32>
    %230 = vector.shape_cast %229 : vector<80xf32> to vector<1x80xf32>
    %cst_90 = arith.constant 0.000000e+00 : f32
    %231 = vector.broadcast %cst_90 : f32 to vector<1x80xf32>
    %232 = arith.maximumf %230, %231 : vector<1x80xf32>
    %c0_91 = arith.constant 0 : index
    %c0_92 = arith.constant 0 : index
    %233 = vector.load %arg12[%c0_91, %c0_92] : memref<80x16xf32, #tpu.memory_space<vmem>>, vector<80x16xf32>
    %cst_93 = arith.constant dense<0.000000e+00> : vector<1x16xf32>
    %234 = tpu.matmul %232, %233, %cst_93 {dimension_numbers = #tpu.dot_dimension_numbers<[1], [0], [0], [1], [0, 0, 1, 1], [], []>} : vector<1x80xf32>, vector<80x16xf32>, vector<1x16xf32> -> vector<1x16xf32>
    %c15 = arith.constant 15 : index
    %c0_94 = arith.constant 0 : index
    %235 = vector.load %arg2[%c15, %c0_94] : memref<17x32xf32, #tpu.memory_space<vmem>>, vector<1x16xf32>
    %236 = arith.addf %234, %235 : vector<1x16xf32>
    %c0_95 = arith.constant 0 : index
    %c0_96 = arith.constant 0 : index
    %237 = vector.load %arg14[%c0_95, %c0_96] : memref<1x16xf32, #tpu.memory_space<vmem>>, vector<1x16xf32>
    tpu.vector_store %arg14[%c0_95, %c0_96], %236 {strides = array<i32>} : memref<1x16xf32, #tpu.memory_space<vmem>>, vector<1x16xf32>,
    %c0_97 = arith.constant 0 : index
    %c0_98 = arith.constant 0 : index
    %238 = vector.load %arg13[%c0_97, %c0_98] : memref<80x16xf32, #tpu.memory_space<vmem>>, vector<80x16xf32>
    %cst_99 = arith.constant dense<0.000000e+00> : vector<16x16xf32>
    %239 = tpu.matmul %228, %238, %cst_99 {dimension_numbers = #tpu.dot_dimension_numbers<[1], [0], [0], [1], [0, 0, 1, 1], [], []>} : vector<16x80xf32>, vector<80x16xf32>, vector<16x16xf32> -> vector<16x16xf32>
    %c16 = arith.constant 16 : index
    %c0_100 = arith.constant 0 : index
    %240 = vector.load %arg2[%c16, %c0_100] : memref<17x32xf32, #tpu.memory_space<vmem>>, vector<1x16xf32>
    %241 = vector.broadcast %240 : vector<1x16xf32> to vector<16x16xf32>
    %242 = arith.addf %239, %241 : vector<16x16xf32>
    %c0_101 = arith.constant 0 : index
    %c0_102 = arith.constant 0 : index
    %243 = vector.load %arg15[%c0_101, %c0_102] : memref<16x16xf32, #tpu.memory_space<vmem>>, vector<16x16xf32>
    tpu.vector_store %arg15[%c0_101, %c0_102], %242 {strides = array<i32>} : memref<16x16xf32, #tpu.memory_space<vmem>>, vector<16x16xf32>,
    return
  }
}

</mosaic_0001>

<llo_original>
// kernel: tpu_custom_call.1
$region0: #{tpu_custom_call.1}
  #allocation0 [shape = 'u32[]', space=smem, size = 0x4, offset = 0x4, fixed_abs, tag = 'smem constant byte address 0x4 - core index']
  #allocation1 [shape = 'u32[72,128]{1,0:T(1,128)}', space=vmem, size = 0x9000, scoped, tag = 'internal scratch']
  %s0 = inlined_call_operand.vmem [shape: f32[16,8], index: 0, kind: input, shape index: {}]
  %s1 = inlined_call_operand.vmem [shape: f32[32,16], index: 1, kind: input, shape index: {}]
  %s2 = inlined_call_operand.vmem [shape: f32[17,32], index: 2, kind: input, shape index: {}]
  %s3 = inlined_call_operand.vmem [shape: f32[8,32], index: 3, kind: input, shape index: {}]
  %s4 = inlined_call_operand.vmem [shape: f32[32,32], index: 4, kind: input, shape index: {}]
  %s5 = inlined_call_operand.vmem [shape: f32[64,32], index: 5, kind: input, shape index: {}]
  %s6 = inlined_call_operand.vmem [shape: f32[32,32], index: 6, kind: input, shape index: {}]
  %s7 = inlined_call_operand.vmem [shape: f32[32,32], index: 7, kind: input, shape index: {}]
  %s8 = inlined_call_operand.vmem [shape: f32[64,32], index: 8, kind: input, shape index: {}]
  %s9 = inlined_call_operand.vmem [shape: f32[32,32], index: 9, kind: input, shape index: {}]
  %s10 = inlined_call_operand.vmem [shape: f32[32,16], index: 10, kind: input, shape index: {}]
  %s11 = inlined_call_operand.vmem [shape: f32[32,16], index: 11, kind: input, shape index: {}]
  %s12 = inlined_call_operand.vmem [shape: f32[80,16], index: 12, kind: input, shape index: {}]
  %s13 = inlined_call_operand.vmem [shape: f32[80,16], index: 13, kind: input, shape index: {}]
  %s14 = inlined_call_operand.hbm [shape: f32[1,16], index: 14, kind: output, shape index: {0}]
  %s15 = inlined_call_operand.hbm [shape: f32[16,16], index: 15, kind: output, shape index: {1}]
  %16 = xla_tuple %s14, %s15
  %s17 = sld [smem:[#allocation0]]
  $region74: #{tpu_custom_call.1} parent=0
    _
  %s19 = ssub.s32 1, %s17
  %s20 = scalar_select 0, %s19, %s17
  $region1: #{tpu_custom_call.1} parent=0
    #allocation2 [shape = 'u8[512]{0}', space=vmem, size = 0x400, scoped, tag = 'output window, operand 0, single buffered']
    #allocation3 [shape = 's32[1]{0}', space=sflag, size = 0x4, scoped, tag = 'scoped memory for tpu_custom_call.1']
    #allocation4 [shape = 'u8[8192]{0}', space=vmem, size = 0x2000, scoped, tag = 'output window, operand 1, single buffered']
    #allocation5 [shape = 's32[1]{0}', space=sflag, size = 0x4, scoped, tag = 'scoped memory for tpu_custom_call.1']
    %21 = vsyncpa [#allocation3], 0
    %22 = vsyncpa [#allocation5], 0
    // Predicated region
    $region2: #{tpu_custom_call.1} parent=1 // pred_check
      _
    $region3: #{tpu_custom_call.1} parent=1 // pred_check_branch
      %24 = sbr.rel (0) target = $region5
    $region4: #{tpu_custom_call.1} parent=1 // pred_region
      _
    $region5: #{tpu_custom_call.1} parent=1 // pred_fallthru
      _
    // Predicated region
    $region6: #{tpu_custom_call.1} parent=1 // pred_check
      _
    $region7: #{tpu_custom_call.1} parent=1 // pred_check_branch
      %26 = sbr.rel (0) target = $region9
    $region8: #{tpu_custom_call.1} parent=1 // pred_region
      _
    $region9: #{tpu_custom_call.1} parent=1 // pred_fallthru
      _
    // Predicated region
    $region10: #{tpu_custom_call.1} parent=1 // pred_check
      _
    $region11: #{tpu_custom_call.1} parent=1 // pred_check_branch
      %28 = sbr.rel (0) target = $region13
    $region12: #{tpu_custom_call.1} parent=1 // pred_region
      _
    $region13: #{tpu_custom_call.1} parent=1 // pred_fallthru
      _
    // Predicated region
    $region14: #{tpu_custom_call.1} parent=1 // pred_check
      _
    $region15: #{tpu_custom_call.1} parent=1 // pred_check_branch
      %30 = sbr.rel (0) target = $region17
    $region16: #{tpu_custom_call.1} parent=1 // pred_region
      _
    $region17: #{tpu_custom_call.1} parent=1 // pred_fallthru
      _
    // Predicated region
    $region18: #{tpu_custom_call.1} parent=1 // pred_check
      _
    $region19: #{tpu_custom_call.1} parent=1 // pred_check_branch
      %32 = sbr.rel (0) target = $region21
    $region20: #{tpu_custom_call.1} parent=1 // pred_region
      _
    $region21: #{tpu_custom_call.1} parent=1 // pred_fallthru
      _
    // Predicated region
    $region22: #{tpu_custom_call.1} parent=1 // pred_check
      _
    $region23: #{tpu_custom_call.1} parent=1 // pred_check_branch
      %34 = sbr.rel (0) target = $region25
    $region24: #{tpu_custom_call.1} parent=1 // pred_region
      _
    $region25: #{tpu_custom_call.1} parent=1 // pred_fallthru
      _
    // Predicated region
    $region26: #{tpu_custom_call.1} parent=1 // pred_check
      _
    $region27: #{tpu_custom_call.1} parent=1 // pred_check_branch
      %36 = sbr.rel (0) target = $region29
    $region28: #{tpu_custom_call.1} parent=1 // pred_region
      _
    $region29: #{tpu_custom_call.1} parent=1 // pred_fallthru
      _
    // Predicated region
    $region30: #{tpu_custom_call.1} parent=1 // pred_check
      _
    $region31: #{tpu_custom_call.1} parent=1 // pred_check_branch
      %38 = sbr.rel (0) target = $region33
    $region32: #{tpu_custom_call.1} parent=1 // pred_region
      _
    $region33: #{tpu_custom_call.1} parent=1 // pred_fallthru
      _
    // Predicated region
    $region34: #{tpu_custom_call.1} parent=1 // pred_check
      _
    $region35: #{tpu_custom_call.1} parent=1 // pred_check_branch
      %40 = sbr.rel (0) target = $region37
    $region36: #{tpu_custom_call.1} parent=1 // pred_region
      _
    $region37: #{tpu_custom_call.1} parent=1 // pred_fallthru
      _
    // Predicated region
    $region38: #{tpu_custom_call.1} parent=1 // pred_check
      _
    $region39: #{tpu_custom_call.1} parent=1 // pred_check_branch
      %42 = sbr.rel (0) target = $region41
    $region40: #{tpu_custom_call.1} parent=1 // pred_region
      _
    $region41: #{tpu_custom_call.1} parent=1 // pred_fallthru
      _
    // Predicated region
    $region42: #{tpu_custom_call.1} parent=1 // pred_check
      _
    $region43: #{tpu_custom_call.1} parent=1 // pred_check_branch
      %44 = sbr.rel (0) target = $region45
    $region44: #{tpu_custom_call.1} parent=1 // pred_region
      _
    $region45: #{tpu_custom_call.1} parent=1 // pred_fallthru
      _
    // Predicated region
    $region46: #{tpu_custom_call.1} parent=1 // pred_check
      _
    $region47: #{tpu_custom_call.1} parent=1 // pred_check_branch
      %46 = sbr.rel (0) target = $region49
    $region48: #{tpu_custom_call.1} parent=1 // pred_region
      _
    $region49: #{tpu_custom_call.1} parent=1 // pred_fallthru
      _
    // Predicated region
    $region50: #{tpu_custom_call.1} parent=1 // pred_check
      _
    $region51: #{tpu_custom_call.1} parent=1 // pred_check_branch
      %48 = sbr.rel (0) target = $region53
    $region52: #{tpu_custom_call.1} parent=1 // pred_region
      _
    $region53: #{tpu_custom_call.1} parent=1 // pred_fallthru
      _
    // Predicated region
    $region54: #{tpu_custom_call.1} parent=1 // pred_check
      _
    $region55: #{tpu_custom_call.1} parent=1 // pred_check_branch
      %50 = sbr.rel (0) target = $region57
    $region56: #{tpu_custom_call.1} parent=1 // pred_region
      _
    $region57: #{tpu_custom_call.1} parent=1 // pred_fallthru
      _
    %v51 = vld [vmem:[%s1] sm:$0xff]
    %v52 = vld [vmem:[%s1 + $0x8] sm:$0xff]
    %v53 = vld [vmem:[%s1 + $0x10] sm:$0xff]
    %v54 = vld [vmem:[%s1 + $0x18] sm:$0xff]
    %v55 = vld [vmem:[%s0] sm:$0xff]
    %v56 = vld [vmem:[%s0 + $0x8] sm:$0xff]
    %v57 = vld [vmem:[%s2] sm:$0x1]
    %v58 = vld [vmem:[%s2 + $0x1] sm:$0x1]
    %v59 = vld [vmem:[%s2 + $0x2] sm:$0x1]
    %v60 = vld [vmem:[%s2 + $0x3] sm:$0x1]
    %v61 = vld [vmem:[%s2 + $0x4] sm:$0x1]
    %vm62 = vcmask 130048
    %v64 = vsel %vm62, %v51, 0
    %v67 = vsel %vm62, %v52, 0
    %v70 = vsel %vm62, %v53, 0
    %v73 = vsel %vm62, %v54, 0
    %75 = vmatpush.msra.mxu0 0.0
    %76 = vmatpush.msra.mxu0 0.0
    %77 = vmatpush.msra.mxu0 0.0
    %78 = vmatpush.msra.mxu0 0.0
    %79 = vmatpush.msra.mxu0 0.0
    %80 = vmatpush.msra.mxu0 0.0
    %81 = vmatpush.msra.mxu0 0.0
    %82 = vmatpush.msra.mxu0 0.0
    %83 = vmatpush.msra.mxu0 0.0
    %84 = vmatpush.msra.mxu0 0.0
    %85 = vmatpush.msra.mxu0 0.0
    %86 = vmatpush.msra.mxu0 0.0
    %87 = vmatpush.msra.mxu0 0.0
    %88 = vmatpush.msra.mxu0 0.0
    %89 = vmatpush.msra.mxu0 %v56
    %90 = vmatpush.msra.mxu0 %v55
    %91 = vmatmul.f32.gmra.mxu0 %v64
    %v92 = vpop.f32.mrf.mxu0
    %v93 = vadd.f32 0.0, %v92
    %94 = vmatmul.f32.gmra.mxu0 %v67
    %v95 = vpop.f32.mrf.mxu0
    %v96 = vadd.f32 0.0, %v95
    %97 = vmatmul.f32.gmra.mxu0 %v70
    %v98 = vpop.f32.mrf.mxu0
    %v99 = vadd.f32 0.0, %v98
    %100 = vmatmul.f32.gmra.mxu0 %v73
    %v101 = vpop.f32.mrf.mxu0
    %v102 = vadd.f32 0.0, %v101
    %103 = vdwg.mxu0
    %v104 = vld [vmem:[%s3] sm:$0xff]
    %v105 = vperm.slane %v57, 0
    %vm106 = vcmask 64512
    %v108 = vsel %vm106, %v93, 0
    %v111 = vsel %vm106, %v96, 0
    %v114 = vsel %vm106, %v99, 0
    %v117 = vsel %vm106, %v102, 0
    %119 = vmatpush.msra.mxu0 0.0
    %120 = vmatpush.msra.mxu0 0.0
    %121 = vmatpush.msra.mxu0 0.0
    %122 = vmatpush.msra.mxu0 0.0
    %123 = vmatpush.msra.mxu0 0.0
    %124 = vmatpush.msra.mxu0 0.0
    %125 = vmatpush.msra.mxu0 0.0
    %126 = vmatpush.msra.mxu0 0.0
    %127 = vmatpush.msra.mxu0 0.0
    %128 = vmatpush.msra.mxu0 0.0
    %129 = vmatpush.msra.mxu0 0.0
    %130 = vmatpush.msra.mxu0 0.0
    %131 = vmatpush.msra.mxu0 0.0
    %132 = vmatpush.msra.mxu0 0.0
    %133 = vmatpush.msra.mxu0 0.0
    %134 = vmatpush.msra.mxu0 %v104
    %135 = vmatmul.f32.gmra.mxu0 %v108
    %v136 = vpop.f32.mrf.mxu0
    %v137 = vadd.f32 %v105, %v136
    %138 = vmatmul.f32.gmra.mxu0 %v111
    %v139 = vpop.f32.mrf.mxu0
    %v140 = vadd.f32 %v105, %v139
    %141 = vmatmul.f32.gmra.mxu0 %v114
    %v142 = vpop.f32.mrf.mxu0
    %v143 = vadd.f32 %v105, %v142
    %144 = vmatmul.f32.gmra.mxu0 %v117
    %v145 = vpop.f32.mrf.mxu0
    %v146 = vadd.f32 %v105, %v145
    %147 = vdwg.mxu0
    %vm148 = vcmask 261120
    %v149 = vsel %vm148, %v137, 0.0
    %v150 = vsel %vm148, %v140, 0.0
    %v151 = vadd.f32 %v149, %v150
    %v152 = vrot.slane %v151, 4
    %v153 = vadd.f32 %v151, %v152
    %v154 = vrot.slane %v153, 2
    %v155 = vadd.f32 %v153, %v154
    %v156 = vrot.slane %v155, 1
    %v157 = vadd.f32 %v155, %v156
    %v158 = vmul.f32 %v157, 0.0625
    %v159 = vmul.f32 %v137, %v137
    %v160 = vmul.f32 %v140, %v140
    %v161 = vsel %vm148, %v159, 0.0
    %v162 = vsel %vm148, %v160, 0.0
    %v163 = vadd.f32 %v161, %v162
    %v164 = vrot.slane %v163, 4
    %v165 = vadd.f32 %v163, %v164
    %v166 = vrot.slane %v165, 2
    %v167 = vadd.f32 %v165, %v166
    %v168 = vrot.slane %v167, 1
    %v169 = vadd.f32 %v167, %v168
    %v170 = vmul.f32 %v169, 0.0625
    %v171 = vmul.f32 %v158, %v158
    %v172 = vsub.f32 %v170, %v171
    %v173 = vsub.f32 %v137, %v158
    %v174 = vsub.f32 %v140, %v158
    %v175 = vadd.f32 %v172, 1e-05
    %v176 = vrsqrt.pop %v175
    %v177 = vmul.f32 %v176, %v175
    %v178 = vmul.f32 %v177, %v176
    %v179 = vmul.f32 0.5, %v178
    %v180 = vsub.f32 1.5, %v179
    %v181 = vmul.f32 %v176, %v180
    %vm182 = vweird.f32 %v175
    %vm183 = vweird.f32 %v176
    %vm184 = vmor %vm182, %vm183
    %v185 = vsel %vm184, %v176, %v181
    %v186 = vmul.f32 %v173, %v185
    %v187 = vmul.f32 %v174, %v185
    %v188 = vperm.slane %v58, 0
    %v189 = vmul.f32 %v186, %v188
    %v190 = vmul.f32 %v187, %v188
    %v191 = vperm.slane %v59, 0
    %v192 = vadd.f32 %v189, %v191
    %v193 = vadd.f32 %v190, %v191
    %v194 = vmax.f32 %v192, 0.0
    %v195 = vmax.f32 %v193, 0.0
    %v196 = vsel %vm148, %v143, 0.0
    %v197 = vsel %vm148, %v146, 0.0
    %v198 = vadd.f32 %v196, %v197
    %v199 = vrot.slane %v198, 4
    %v200 = vadd.f32 %v198, %v199
    %v201 = vrot.slane %v200, 2
    %v202 = vadd.f32 %v200, %v201
    %v203 = vrot.slane %v202, 1
    %v204 = vadd.f32 %v202, %v203
    %v205 = vmul.f32 %v204, 0.0625
    %v206 = vmul.f32 %v143, %v143
    %v207 = vmul.f32 %v146, %v146
    %v208 = vsel %vm148, %v206, 0.0
    %v209 = vsel %vm148, %v207, 0.0
    %v210 = vadd.f32 %v208, %v209
    %v211 = vrot.slane %v210, 4
    %v212 = vadd.f32 %v210, %v211
    %v213 = vrot.slane %v212, 2
    %v214 = vadd.f32 %v212, %v213
    %v215 = vrot.slane %v214, 1
    %v216 = vadd.f32 %v214, %v215
    %v217 = vmul.f32 %v216, 0.0625
    %v218 = vmul.f32 %v205, %v205
    %v219 = vsub.f32 %v217, %v218
    %v220 = vsub.f32 %v143, %v205
    %v221 = vsub.f32 %v146, %v205
    %v222 = vadd.f32 %v219, 1e-05
    %v223 = vrsqrt.pop %v222
    %v224 = vmul.f32 %v223, %v222
    %v225 = vmul.f32 %v224, %v223
    %v226 = vmul.f32 0.5, %v225
    %v227 = vsub.f32 1.5, %v226
    %v228 = vmul.f32 %v223, %v227
    %vm229 = vweird.f32 %v222
    %vm230 = vweird.f32 %v223
    %vm231 = vmor %vm229, %vm230
    %v232 = vsel %vm231, %v223, %v228
    %v233 = vmul.f32 %v220, %v232
    %v234 = vmul.f32 %v221, %v232
    %v235 = vmul.f32 %v233, %v188
    %v236 = vmul.f32 %v234, %v188
    %v237 = vadd.f32 %v235, %v191
    %v238 = vadd.f32 %v236, %v191
    %v239 = vmax.f32 %v237, 0.0
    %v240 = vmax.f32 %v238, 0.0
    %v241 = vld [vmem:[%s4] sm:$0xff]
    %v242 = vld [vmem:[%s4 + $0x8] sm:$0xff]
    %v243 = vld [vmem:[%s4 + $0x10] sm:$0xff]
    %v244 = vld [vmem:[%s4 + $0x18] sm:$0xff]
    %v245 = vperm.slane %v60, 0
    %v247 = vsel %vm148, %v194, 0
    %v250 = vsel %vm148, %v195, 0
    %v253 = vsel %vm148, %v239, 0
    %v256 = vsel %vm148, %v240, 0
    %258 = vmatpush.msra.mxu0 0.0
    %259 = vmatpush.msra.mxu0 0.0
    %260 = vmatpush.msra.mxu0 0.0
    %261 = vmatpush.msra.mxu0 0.0
    %262 = vmatpush.msra.mxu0 0.0
    %263 = vmatpush.msra.mxu0 0.0
    %264 = vmatpush.msra.mxu0 0.0
    %265 = vmatpush.msra.mxu0 0.0
    %266 = vmatpush.msra.mxu0 0.0
    %267 = vmatpush.msra.mxu0 0.0
    %268 = vmatpush.msra.mxu0 0.0
    %269 = vmatpush.msra.mxu0 0.0
    %270 = vmatpush.msra.mxu0 %v244
    %271 = vmatpush.msra.mxu0 %v243
    %272 = vmatpush.msra.mxu0 %v242
    %273 = vmatpush.msra.mxu0 %v241
    %274 = vmatmul.f32.gmra.mxu0 %v247
    %v275 = vpop.f32.mrf.mxu0
    %v276 = vadd.f32 %v245, %v275
    %277 = vmatmul.f32.gmra.mxu0 %v250
    %v278 = vpop.f32.mrf.mxu0
    %v279 = vadd.f32 %v245, %v278
    %280 = vmatmul.f32.gmra.mxu0 %v253
    %v281 = vpop.f32.mrf.mxu0
    %v282 = vadd.f32 %v245, %v281
    %283 = vmatmul.f32.gmra.mxu0 %v256
    %v284 = vpop.f32.mrf.mxu0
    %v285 = vadd.f32 %v245, %v284
    %286 = vdwg.mxu0
    %v287 = vmax.f32 %v276, 0.0
    %v288 = vmax.f32 %v279, 0.0
    %v289 = vmax.f32 %v282, 0.0
    %v290 = vmax.f32 %v285, 0.0
    %293 = vrot.lane.b32.xlu0 %v289, 32
    %v294 = vpop.permute.xlu0 %293
    %295 = vrot.lane.b32.xlu0 %v290, 32
    %v296 = vpop.permute.xlu0 %295
    %v299 = vsel %vm148, %v287, %v294
    %v300 = vsel %vm148, %v288, %v296
    %v301 = vld [vmem:[%s5] sm:$0xff]
    %v302 = vld [vmem:[%s5 + $0x8] sm:$0xff]
    %v303 = vld [vmem:[%s5 + $0x10] sm:$0xff]
    %v304 = vld [vmem:[%s5 + $0x18] sm:$0xff]
    %v305 = vld [vmem:[%s5 + $0x20] sm:$0xff]
    %v306 = vld [vmem:[%s5 + $0x28] sm:$0xff]
    %v307 = vld [vmem:[%s5 + $0x30] sm:$0xff]
    %v308 = vld [vmem:[%s5 + $0x38] sm:$0xff]
    %v309 = vperm.slane %v61, 0
    %vm310 = vcmask 523264
    %v312 = vsel %vm310, %v299, 0
    %v315 = vsel %vm310, %v300, 0
    %317 = vmatpush.msra.mxu0 0.0
    %318 = vmatpush.msra.mxu0 0.0
    %319 = vmatpush.msra.mxu0 0.0
    %320 = vmatpush.msra.mxu0 0.0
    %321 = vmatpush.msra.mxu0 0.0
    %322 = vmatpush.msra.mxu0 0.0
    %323 = vmatpush.msra.mxu0 0.0
    %324 = vmatpush.msra.mxu0 0.0
    %325 = vmatpush.msra.mxu0 %v308
    %326 = vmatpush.msra.mxu0 %v307
    %327 = vmatpush.msra.mxu0 %v306
    %328 = vmatpush.msra.mxu0 %v305
    %329 = vmatpush.msra.mxu0 %v304
    %330 = vmatpush.msra.mxu0 %v303
    %331 = vmatpush.msra.mxu0 %v302
    %332 = vmatpush.msra.mxu0 %v301
    %333 = vmatmul.f32.gmra.mxu0 %v312
    %v334 = vpop.f32.mrf.mxu0
    %v335 = vadd.f32 %v309, %v334
    %336 = vmatmul.f32.gmra.mxu0 %v315
    %v337 = vpop.f32.mrf.mxu0
    %v338 = vadd.f32 %v309, %v337
    %339 = vdwg.mxu0
    %v340 = vmax.f32 %v335, 0.0
    %v341 = vmax.f32 %v338, 0.0
    %v342 = vld [vmem:[%s2 + $0x5] sm:$0x1]
    %v343 = vld [vmem:[%s2 + $0x6] sm:$0x1]
    %v344 = vld [vmem:[%s2 + $0x7] sm:$0x1]
    %v345 = vld [vmem:[%s2 + $0x8] sm:$0x1]
    %v346 = vld [vmem:[%s2 + $0x9] sm:$0x1]
    %347 = vmatpush.msra.mxu0 0.0
    %348 = vmatpush.msra.mxu0 0.0
    %349 = vmatpush.msra.mxu0 0.0
    %350 = vmatpush.msra.mxu0 0.0
    %351 = vmatpush.msra.mxu0 0.0
    %352 = vmatpush.msra.mxu0 0.0
    %353 = vmatpush.msra.mxu0 0.0
    %354 = vmatpush.msra.mxu0 0.0
    %355 = vmatpush.msra.mxu0 0.0
    %356 = vmatpush.msra.mxu0 0.0
    %357 = vmatpush.msra.mxu0 0.0
    %358 = vmatpush.msra.mxu0 0.0
    %359 = vmatpush.msra.mxu0 0.0
    %360 = vmatpush.msra.mxu0 0.0
    %361 = vmatpush.msra.mxu0 %v341
    %362 = vmatpush.msra.mxu0 %v340
    %363 = vmatmul.f32.gmra.mxu0 %v64
    %v364 = vpop.f32.mrf.mxu0
    %v365 = vadd.f32 0.0, %v364
    %366 = vmatmul.f32.gmra.mxu0 %v67
    %v367 = vpop.f32.mrf.mxu0
    %v368 = vadd.f32 0.0, %v367
    %369 = vmatmul.f32.gmra.mxu0 %v70
    %v370 = vpop.f32.mrf.mxu0
    %v371 = vadd.f32 0.0, %v370
    %372 = vmatmul.f32.gmra.mxu0 %v73
    %v373 = vpop.f32.mrf.mxu0
    %v374 = vadd.f32 0.0, %v373
    %375 = vdwg.mxu0
    %v376 = vld [vmem:[%s6] sm:$0xff]
    %v377 = vld [vmem:[%s6 + $0x8] sm:$0xff]
    %v378 = vld [vmem:[%s6 + $0x10] sm:$0xff]
    %v379 = vld [vmem:[%s6 + $0x18] sm:$0xff]
    %v380 = vperm.slane %v342, 0
    %v382 = vsel %vm148, %v365, 0
    %v385 = vsel %vm148, %v368, 0
    %v388 = vsel %vm148, %v371, 0
    %v391 = vsel %vm148, %v374, 0
    %393 = vmatpush.msra.mxu0 0.0
    %394 = vmatpush.msra.mxu0 0.0
    %395 = vmatpush.msra.mxu0 0.0
    %396 = vmatpush.msra.mxu0 0.0
    %397 = vmatpush.msra.mxu0 0.0
    %398 = vmatpush.msra.mxu0 0.0
    %399 = vmatpush.msra.mxu0 0.0
    %400 = vmatpush.msra.mxu0 0.0
    %401 = vmatpush.msra.mxu0 0.0
    %402 = vmatpush.msra.mxu0 0.0
    %403 = vmatpush.msra.mxu0 0.0
    %404 = vmatpush.msra.mxu0 0.0
    %405 = vmatpush.msra.mxu0 %v379
    %406 = vmatpush.msra.mxu0 %v378
    %407 = vmatpush.msra.mxu0 %v377
    %408 = vmatpush.msra.mxu0 %v376
    %409 = vmatmul.f32.gmra.mxu0 %v382
    %v410 = vpop.f32.mrf.mxu0
    %v411 = vadd.f32 %v380, %v410
    %412 = vmatmul.f32.gmra.mxu0 %v385
    %v413 = vpop.f32.mrf.mxu0
    %v414 = vadd.f32 %v380, %v413
    %415 = vmatmul.f32.gmra.mxu0 %v388
    %v416 = vpop.f32.mrf.mxu0
    %v417 = vadd.f32 %v380, %v416
    %418 = vmatmul.f32.gmra.mxu0 %v391
    %v419 = vpop.f32.mrf.mxu0
    %v420 = vadd.f32 %v380, %v419
    %421 = vdwg.mxu0
    %v422 = vsel %vm148, %v411, 0.0
    %v423 = vsel %vm148, %v414, 0.0
    %v424 = vadd.f32 %v422, %v423
    %v425 = vrot.slane %v424, 4
    %v426 = vadd.f32 %v424, %v425
    %v427 = vrot.slane %v426, 2
    %v428 = vadd.f32 %v426, %v427
    %v429 = vrot.slane %v428, 1
    %v430 = vadd.f32 %v428, %v429
    %v431 = vmul.f32 %v430, 0.0625
    %v432 = vmul.f32 %v411, %v411
    %v433 = vmul.f32 %v414, %v414
    %v434 = vsel %vm148, %v432, 0.0
    %v435 = vsel %vm148, %v433, 0.0
    %v436 = vadd.f32 %v434, %v435
    %v437 = vrot.slane %v436, 4
    %v438 = vadd.f32 %v436, %v437
    %v439 = vrot.slane %v438, 2
    %v440 = vadd.f32 %v438, %v439
    %v441 = vrot.slane %v440, 1
    %v442 = vadd.f32 %v440, %v441
    %v443 = vmul.f32 %v442, 0.0625
    %v444 = vmul.f32 %v431, %v431
    %v445 = vsub.f32 %v443, %v444
    %v446 = vsub.f32 %v411, %v431
    %v447 = vsub.f32 %v414, %v431
    %v448 = vadd.f32 %v445, 1e-05
    %v449 = vrsqrt.pop %v448
    %v450 = vmul.f32 %v449, %v448
    %v451 = vmul.f32 %v450, %v449
    %v452 = vmul.f32 0.5, %v451
    %v453 = vsub.f32 1.5, %v452
    %v454 = vmul.f32 %v449, %v453
    %vm455 = vweird.f32 %v448
    %vm456 = vweird.f32 %v449
    %vm457 = vmor %vm455, %vm456
    %v458 = vsel %vm457, %v449, %v454
    %v459 = vmul.f32 %v446, %v458
    %v460 = vmul.f32 %v447, %v458
    %v461 = vperm.slane %v343, 0
    %v462 = vmul.f32 %v459, %v461
    %v463 = vmul.f32 %v460, %v461
    %v464 = vperm.slane %v344, 0
    %v465 = vadd.f32 %v462, %v464
    %v466 = vadd.f32 %v463, %v464
    %v467 = vmax.f32 %v465, 0.0
    %v468 = vmax.f32 %v466, 0.0
    %v469 = vsel %vm148, %v417, 0.0
    %v470 = vsel %vm148, %v420, 0.0
    %v471 = vadd.f32 %v469, %v470
    %v472 = vrot.slane %v471, 4
    %v473 = vadd.f32 %v471, %v472
    %v474 = vrot.slane %v473, 2
    %v475 = vadd.f32 %v473, %v474
    %v476 = vrot.slane %v475, 1
    %v477 = vadd.f32 %v475, %v476
    %v478 = vmul.f32 %v477, 0.0625
    %v479 = vmul.f32 %v417, %v417
    %v480 = vmul.f32 %v420, %v420
    %v481 = vsel %vm148, %v479, 0.0
    %v482 = vsel %vm148, %v480, 0.0
    %v483 = vadd.f32 %v481, %v482
    %v484 = vrot.slane %v483, 4
    %v485 = vadd.f32 %v483, %v484
    %v486 = vrot.slane %v485, 2
    %v487 = vadd.f32 %v485, %v486
    %v488 = vrot.slane %v487, 1
    %v489 = vadd.f32 %v487, %v488
    %v490 = vmul.f32 %v489, 0.0625
    %v491 = vmul.f32 %v478, %v478
    %v492 = vsub.f32 %v490, %v491
    %v493 = vsub.f32 %v417, %v478
    %v494 = vsub.f32 %v420, %v478
    %v495 = vadd.f32 %v492, 1e-05
    %v496 = vrsqrt.pop %v495
    %v497 = vmul.f32 %v496, %v495
    %v498 = vmul.f32 %v497, %v496
    %v499 = vmul.f32 0.5, %v498
    %v500 = vsub.f32 1.5, %v499
    %v501 = vmul.f32 %v496, %v500
    %vm502 = vweird.f32 %v495
    %vm503 = vweird.f32 %v496
    %vm504 = vmor %vm502, %vm503
    %v505 = vsel %vm504, %v496, %v501
    %v506 = vmul.f32 %v493, %v505
    %v507 = vmul.f32 %v494, %v505
    %v508 = vmul.f32 %v506, %v461
    %v509 = vmul.f32 %v507, %v461
    %v510 = vadd.f32 %v508, %v464
    %v511 = vadd.f32 %v509, %v464
    %v512 = vmax.f32 %v510, 0.0
    %v513 = vmax.f32 %v511, 0.0
    %v514 = vld [vmem:[%s7] sm:$0xff]
    %v515 = vld [vmem:[%s7 + $0x8] sm:$0xff]
    %v516 = vld [vmem:[%s7 + $0x10] sm:$0xff]
    %v517 = vld [vmem:[%s7 + $0x18] sm:$0xff]
    %v518 = vperm.slane %v345, 0
    %v520 = vsel %vm148, %v467, 0
    %v523 = vsel %vm148, %v468, 0
    %v526 = vsel %vm148, %v512, 0
    %v529 = vsel %vm148, %v513, 0
    %531 = vmatpush.msra.mxu0 0.0
    %532 = vmatpush.msra.mxu0 0.0
    %533 = vmatpush.msra.mxu0 0.0
    %534 = vmatpush.msra.mxu0 0.0
    %535 = vmatpush.msra.mxu0 0.0
    %536 = vmatpush.msra.mxu0 0.0
    %537 = vmatpush.msra.mxu0 0.0
    %538 = vmatpush.msra.mxu0 0.0
    %539 = vmatpush.msra.mxu0 0.0
    %540 = vmatpush.msra.mxu0 0.0
    %541 = vmatpush.msra.mxu0 0.0
    %542 = vmatpush.msra.mxu0 0.0
    %543 = vmatpush.msra.mxu0 %v517
    %544 = vmatpush.msra.mxu0 %v516
    %545 = vmatpush.msra.mxu0 %v515
    %546 = vmatpush.msra.mxu0 %v514
    %547 = vmatmul.f32.gmra.mxu0 %v520
    %v548 = vpop.f32.mrf.mxu0
    %v549 = vadd.f32 %v518, %v548
    %550 = vmatmul.f32.gmra.mxu0 %v523
    %v551 = vpop.f32.mrf.mxu0
    %v552 = vadd.f32 %v518, %v551
    %553 = vmatmul.f32.gmra.mxu0 %v526
    %v554 = vpop.f32.mrf.mxu0
    %v555 = vadd.f32 %v518, %v554
    %556 = vmatmul.f32.gmra.mxu0 %v529
    %v557 = vpop.f32.mrf.mxu0
    %v558 = vadd.f32 %v518, %v557
    %559 = vdwg.mxu0
    %v560 = vmax.f32 %v549, 0.0
    %v561 = vmax.f32 %v552, 0.0
    %v562 = vmax.f32 %v555, 0.0
    %v563 = vmax.f32 %v558, 0.0
    %566 = vrot.lane.b32.xlu0 %v562, 32
    %v567 = vpop.permute.xlu0 %566
    %568 = vrot.lane.b32.xlu0 %v563, 32
    %v569 = vpop.permute.xlu0 %568
    %v572 = vsel %vm148, %v560, %v567
    %v573 = vsel %vm148, %v561, %v569
    %v574 = vld [vmem:[%s8] sm:$0xff]
    %v575 = vld [vmem:[%s8 + $0x8] sm:$0xff]
    %v576 = vld [vmem:[%s8 + $0x10] sm:$0xff]
    %v577 = vld [vmem:[%s8 + $0x18] sm:$0xff]
    %v578 = vld [vmem:[%s8 + $0x20] sm:$0xff]
    %v579 = vld [vmem:[%s8 + $0x28] sm:$0xff]
    %v580 = vld [vmem:[%s8 + $0x30] sm:$0xff]
    %v581 = vld [vmem:[%s8 + $0x38] sm:$0xff]
    %v582 = vperm.slane %v346, 0
    %v584 = vsel %vm310, %v572, 0
    %v587 = vsel %vm310, %v573, 0
    %589 = vmatpush.msra.mxu0 0.0
    %590 = vmatpush.msra.mxu0 0.0
    %591 = vmatpush.msra.mxu0 0.0
    %592 = vmatpush.msra.mxu0 0.0
    %593 = vmatpush.msra.mxu0 0.0
    %594 = vmatpush.msra.mxu0 0.0
    %595 = vmatpush.msra.mxu0 0.0
    %596 = vmatpush.msra.mxu0 0.0
    %597 = vmatpush.msra.mxu0 %v581
    %598 = vmatpush.msra.mxu0 %v580
    %599 = vmatpush.msra.mxu0 %v579
    %600 = vmatpush.msra.mxu0 %v578
    %601 = vmatpush.msra.mxu0 %v577
    %602 = vmatpush.msra.mxu0 %v576
    %603 = vmatpush.msra.mxu0 %v575
    %604 = vmatpush.msra.mxu0 %v574
    %605 = vmatmul.f32.gmra.mxu0 %v584
    %v606 = vpop.f32.mrf.mxu0
    %v607 = vadd.f32 %v582, %v606
    %608 = vmatmul.f32.gmra.mxu0 %v587
    %v609 = vpop.f32.mrf.mxu0
    %v610 = vadd.f32 %v582, %v609
    %611 = vdwg.mxu0
    %v612 = vmax.f32 %v607, 0.0
    %v613 = vmax.f32 %v610, 0.0
    %v614 = vld [vmem:[%s2 + $0xa] sm:$0x1]
    %v615 = vld [vmem:[%s2 + $0xb] sm:$0x1]
    %v616 = vld [vmem:[%s2 + $0xc] sm:$0x1]
    %v617 = vld [vmem:[%s2 + $0xd] sm:$0x1]
    %v618 = vld [vmem:[%s2 + $0xe] sm:$0x1]
    %619 = vmatpush.msra.mxu0 0.0
    %620 = vmatpush.msra.mxu0 0.0
    %621 = vmatpush.msra.mxu0 0.0
    %622 = vmatpush.msra.mxu0 0.0
    %623 = vmatpush.msra.mxu0 0.0
    %624 = vmatpush.msra.mxu0 0.0
    %625 = vmatpush.msra.mxu0 0.0
    %626 = vmatpush.msra.mxu0 0.0
    %627 = vmatpush.msra.mxu0 0.0
    %628 = vmatpush.msra.mxu0 0.0
    %629 = vmatpush.msra.mxu0 0.0
    %630 = vmatpush.msra.mxu0 0.0
    %631 = vmatpush.msra.mxu0 0.0
    %632 = vmatpush.msra.mxu0 0.0
    %633 = vmatpush.msra.mxu0 %v613
    %634 = vmatpush.msra.mxu0 %v612
    %635 = vmatmul.f32.gmra.mxu0 %v64
    %v636 = vpop.f32.mrf.mxu0
    %v637 = vadd.f32 0.0, %v636
    %638 = vmatmul.f32.gmra.mxu0 %v67
    %v639 = vpop.f32.mrf.mxu0
    %v640 = vadd.f32 0.0, %v639
    %641 = vmatmul.f32.gmra.mxu0 %v70
    %v642 = vpop.f32.mrf.mxu0
    %v643 = vadd.f32 0.0, %v642
    %644 = vmatmul.f32.gmra.mxu0 %v73
    %v645 = vpop.f32.mrf.mxu0
    %v646 = vadd.f32 0.0, %v645
    %647 = vdwg.mxu0
    %v648 = vld [vmem:[%s9] sm:$0xff]
    %v649 = vld [vmem:[%s9 + $0x8] sm:$0xff]
    %v650 = vld [vmem:[%s9 + $0x10] sm:$0xff]
    %v651 = vld [vmem:[%s9 + $0x18] sm:$0xff]
    %v652 = vperm.slane %v614, 0
    %v654 = vsel %vm148, %v637, 0
    %v657 = vsel %vm148, %v640, 0
    %v660 = vsel %vm148, %v643, 0
    %v663 = vsel %vm148, %v646, 0
    %665 = vmatpush.msra.mxu0 0.0
    %666 = vmatpush.msra.mxu0 0.0
    %667 = vmatpush.msra.mxu0 0.0
    %668 = vmatpush.msra.mxu0 0.0
    %669 = vmatpush.msra.mxu0 0.0
    %670 = vmatpush.msra.mxu0 0.0
    %671 = vmatpush.msra.mxu0 0.0
    %672 = vmatpush.msra.mxu0 0.0
    %673 = vmatpush.msra.mxu0 0.0
    %674 = vmatpush.msra.mxu0 0.0
    %675 = vmatpush.msra.mxu0 0.0
    %676 = vmatpush.msra.mxu0 0.0
    %677 = vmatpush.msra.mxu0 %v651
    %678 = vmatpush.msra.mxu0 %v650
    %679 = vmatpush.msra.mxu0 %v649
    %680 = vmatpush.msra.mxu0 %v648
    %681 = vmatmul.f32.gmra.mxu0 %v654
    %v682 = vpop.f32.mrf.mxu0
    %v683 = vadd.f32 %v652, %v682
    %684 = vmatmul.f32.gmra.mxu0 %v657
    %v685 = vpop.f32.mrf.mxu0
    %v686 = vadd.f32 %v652, %v685
    %687 = vmatmul.f32.gmra.mxu0 %v660
    %v688 = vpop.f32.mrf.mxu0
    %v689 = vadd.f32 %v652, %v688
    %690 = vmatmul.f32.gmra.mxu0 %v663
    %v691 = vpop.f32.mrf.mxu0
    %v692 = vadd.f32 %v652, %v691
    %693 = vdwg.mxu0
    %v694 = vsel %vm148, %v683, 0.0
    %v695 = vsel %vm148, %v686, 0.0
    %v696 = vadd.f32 %v694, %v695
    %v697 = vrot.slane %v696, 4
    %v698 = vadd.f32 %v696, %v697
    %v699 = vrot.slane %v698, 2
    %v700 = vadd.f32 %v698, %v699
    %v701 = vrot.slane %v700, 1
    %v702 = vadd.f32 %v700, %v701
    %v703 = vmul.f32 %v702, 0.0625
    %v704 = vmul.f32 %v683, %v683
    %v705 = vmul.f32 %v686, %v686
    %v706 = vsel %vm148, %v704, 0.0
    %v707 = vsel %vm148, %v705, 0.0
    %v708 = vadd.f32 %v706, %v707
    %v709 = vrot.slane %v708, 4
    %v710 = vadd.f32 %v708, %v709
    %v711 = vrot.slane %v710, 2
    %v712 = vadd.f32 %v710, %v711
    %v713 = vrot.slane %v712, 1
    %v714 = vadd.f32 %v712, %v713
    %v715 = vmul.f32 %v714, 0.0625
    %v716 = vmul.f32 %v703, %v703
    %v717 = vsub.f32 %v715, %v716
    %v718 = vsub.f32 %v683, %v703
    %v719 = vsub.f32 %v686, %v703
    %v720 = vadd.f32 %v717, 1e-05
    %v721 = vrsqrt.pop %v720
    %v722 = vmul.f32 %v721, %v720
    %v723 = vmul.f32 %v722, %v721
    %v724 = vmul.f32 0.5, %v723
    %v725 = vsub.f32 1.5, %v724
    %v726 = vmul.f32 %v721, %v725
    %vm727 = vweird.f32 %v720
    %vm728 = vweird.f32 %v721
    %vm729 = vmor %vm727, %vm728
    %v730 = vsel %vm729, %v721, %v726
    %v731 = vmul.f32 %v718, %v730
    %v732 = vmul.f32 %v719, %v730
    %v733 = vperm.slane %v615, 0
    %v734 = vmul.f32 %v731, %v733
    %v735 = vmul.f32 %v732, %v733
    %v736 = vperm.slane %v616, 0
    %v737 = vadd.f32 %v734, %v736
    %v738 = vadd.f32 %v735, %v736
    %v739 = vmax.f32 %v737, 0.0
    %v740 = vmax.f32 %v738, 0.0
    %v741 = vsel %vm148, %v689, 0.0
    %v742 = vsel %vm148, %v692, 0.0
    %v743 = vadd.f32 %v741, %v742
    %v744 = vrot.slane %v743, 4
    %v745 = vadd.f32 %v743, %v744
    %v746 = vrot.slane %v745, 2
    %v747 = vadd.f32 %v745, %v746
    %v748 = vrot.slane %v747, 1
    %v749 = vadd.f32 %v747, %v748
    %v750 = vmul.f32 %v749, 0.0625
    %v751 = vmul.f32 %v689, %v689
    %v752 = vmul.f32 %v692, %v692
    %v753 = vsel %vm148, %v751, 0.0
    %v754 = vsel %vm148, %v752, 0.0
    %v755 = vadd.f32 %v753, %v754
    %v756 = vrot.slane %v755, 4
    %v757 = vadd.f32 %v755, %v756
    %v758 = vrot.slane %v757, 2
    %v759 = vadd.f32 %v757, %v758
    %v760 = vrot.slane %v759, 1
    %v761 = vadd.f32 %v759, %v760
    %v762 = vmul.f32 %v761, 0.0625
    %v763 = vmul.f32 %v750, %v750
    %v764 = vsub.f32 %v762, %v763
    %v765 = vsub.f32 %v689, %v750
    %v766 = vsub.f32 %v692, %v750
    %v767 = vadd.f32 %v764, 1e-05
    %v768 = vrsqrt.pop %v767
    %v769 = vmul.f32 %v768, %v767
    %v770 = vmul.f32 %v769, %v768
    %v771 = vmul.f32 0.5, %v770
    %v772 = vsub.f32 1.5, %v771
    %v773 = vmul.f32 %v768, %v772
    %vm774 = vweird.f32 %v767
    %vm775 = vweird.f32 %v768
    %vm776 = vmor %vm774, %vm775
    %v777 = vsel %vm776, %v768, %v773
    %v778 = vmul.f32 %v765, %v777
    %v779 = vmul.f32 %v766, %v777
    %v780 = vmul.f32 %v778, %v733
    %v781 = vmul.f32 %v779, %v733
    %v782 = vadd.f32 %v780, %v736
    %v783 = vadd.f32 %v781, %v736
    %v784 = vmax.f32 %v782, 0.0
    %v785 = vmax.f32 %v783, 0.0
    %v786 = vld [vmem:[%s10] sm:$0xff]
    %v787 = vld [vmem:[%s10 + $0x8] sm:$0xff]
    %v788 = vld [vmem:[%s10 + $0x10] sm:$0xff]
    %v789 = vld [vmem:[%s10 + $0x18] sm:$0xff]
    %v790 = vperm.slane %v617, 0
    %v792 = vsel %vm148, %v739, 0
    %v795 = vsel %vm148, %v740, 0
    %v798 = vsel %vm148, %v784, 0
    %v801 = vsel %vm148, %v785, 0
    %803 = vmatpush.msra.mxu0 0.0
    %804 = vmatpush.msra.mxu0 0.0
    %805 = vmatpush.msra.mxu0 0.0
    %806 = vmatpush.msra.mxu0 0.0
    %807 = vmatpush.msra.mxu0 0.0
    %808 = vmatpush.msra.mxu0 0.0
    %809 = vmatpush.msra.mxu0 0.0
    %810 = vmatpush.msra.mxu0 0.0
    %811 = vmatpush.msra.mxu0 0.0
    %812 = vmatpush.msra.mxu0 0.0
    %813 = vmatpush.msra.mxu0 0.0
    %814 = vmatpush.msra.mxu0 0.0
    %815 = vmatpush.msra.mxu0 %v789
    %816 = vmatpush.msra.mxu0 %v788
    %817 = vmatpush.msra.mxu0 %v787
    %818 = vmatpush.msra.mxu0 %v786
    %819 = vmatmul.f32.gmra.mxu0 %v792
    %v820 = vpop.f32.mrf.mxu0
    %v821 = vadd.f32 %v790, %v820
    %822 = vmatmul.f32.gmra.mxu0 %v795
    %v823 = vpop.f32.mrf.mxu0
    %v824 = vadd.f32 %v790, %v823
    %825 = vmatmul.f32.gmra.mxu0 %v798
    %v826 = vpop.f32.mrf.mxu0
    %v827 = vadd.f32 %v790, %v826
    %828 = vmatmul.f32.gmra.mxu0 %v801
    %v829 = vpop.f32.mrf.mxu0
    %v830 = vadd.f32 %v790, %v829
    %831 = vdwg.mxu0
    %834 = vrot.lane.b32.xlu0 %v827, 16
    %v835 = vpop.permute.xlu0 %834
    %836 = vrot.lane.b32.xlu0 %v830, 16
    %v837 = vpop.permute.xlu0 %836
    %v840 = vsel %vm62, %v821, %v835
    %v841 = vsel %vm62, %v824, %v837
    %v842 = vld [vmem:[%s11] sm:$0xff]
    %v843 = vld [vmem:[%s11 + $0x8] sm:$0xff]
    %v844 = vld [vmem:[%s11 + $0x10] sm:$0xff]
    %v845 = vld [vmem:[%s11 + $0x18] sm:$0xff]
    %v846 = vperm.slane %v618, 0
    %v848 = vsel %vm148, %v840, 0
    %v851 = vsel %vm148, %v841, 0
    %853 = vmatpush.msra.mxu0 0.0
    %854 = vmatpush.msra.mxu0 0.0
    %855 = vmatpush.msra.mxu0 0.0
    %856 = vmatpush.msra.mxu0 0.0
    %857 = vmatpush.msra.mxu0 0.0
    %858 = vmatpush.msra.mxu0 0.0
    %859 = vmatpush.msra.mxu0 0.0
    %860 = vmatpush.msra.mxu0 0.0
    %861 = vmatpush.msra.mxu0 0.0
    %862 = vmatpush.msra.mxu0 0.0
    %863 = vmatpush.msra.mxu0 0.0
    %864 = vmatpush.msra.mxu0 0.0
    %865 = vmatpush.msra.mxu0 %v845
    %866 = vmatpush.msra.mxu0 %v844
    %867 = vmatpush.msra.mxu0 %v843
    %868 = vmatpush.msra.mxu0 %v842
    %869 = vmatmul.f32.gmra.mxu0 %v848
    %v870 = vpop.f32.mrf.mxu0
    %v871 = vadd.f32 %v846, %v870
    %872 = vmatmul.f32.gmra.mxu0 %v851
    %v873 = vpop.f32.mrf.mxu0
    %v874 = vadd.f32 %v846, %v873
    %875 = vdwg.mxu0
    %v876 = vmax.f32 %v871, 0.0
    %v877 = vmax.f32 %v874, 0.0
    %880 = vrot.lane.b32.xlu0 %v612, 32
    %v881 = vpop.permute.xlu0 %880
    %882 = vrot.lane.b32.xlu0 %v613, 32
    %v883 = vpop.permute.xlu0 %882
    %888 = vrot.lane.b32.xlu0 %v876, 64
    %v889 = vpop.permute.xlu0 %888
    %890 = vrot.lane.b32.xlu0 %v877, 64
    %v891 = vpop.permute.xlu0 %890
    %v894 = vsel %vm148, %v340, %v881
    %v895 = vsel %vm148, %v341, %v883
    %v896 = vsel %vm310, %v894, %v889
    %v897 = vsel %vm310, %v895, %v891
    %vm898 = vcmask 654336
    %v899 = vsel %vm898, %v896, 0.0
    %v900 = vsel %vm898, %v897, 0.0
    %v901 = vadd.f32 %v899, %v900
    %v902 = vrot.slane %v901, 4
    %v903 = vadd.f32 %v901, %v902
    %v904 = vrot.slane %v903, 2
    %v905 = vadd.f32 %v903, %v904
    %v906 = vrot.slane %v905, 1
    %v907 = vadd.f32 %v905, %v906
    %v908 = vmax.f32 %v907, 0.0
    %v909 = vld [vmem:[%s12] sm:$0xff]
    %v910 = vld [vmem:[%s12 + $0x8] sm:$0xff]
    %v911 = vld [vmem:[%s12 + $0x10] sm:$0xff]
    %v912 = vld [vmem:[%s12 + $0x18] sm:$0xff]
    %v913 = vld [vmem:[%s12 + $0x20] sm:$0xff]
    %v914 = vld [vmem:[%s12 + $0x28] sm:$0xff]
    %v915 = vld [vmem:[%s12 + $0x30] sm:$0xff]
    %v916 = vld [vmem:[%s12 + $0x38] sm:$0xff]
    %v917 = vld [vmem:[%s12 + $0x40] sm:$0xff]
    %v918 = vld [vmem:[%s12 + $0x48] sm:$0xff]
    %v919 = vld [vmem:[%s2 + $0xf] sm:$0x1]
    %v921 = vsel %vm898, %v908, 0
    %923 = vmatpush.msra.mxu0 0.0
    %924 = vmatpush.msra.mxu0 0.0
    %925 = vmatpush.msra.mxu0 0.0
    %926 = vmatpush.msra.mxu0 0.0
    %927 = vmatpush.msra.mxu0 0.0
    %928 = vmatpush.msra.mxu0 0.0
    %929 = vmatpush.msra.mxu0 %v918
    %930 = vmatpush.msra.mxu0 %v917
    %931 = vmatpush.msra.mxu0 %v916
    %932 = vmatpush.msra.mxu0 %v915
    %933 = vmatpush.msra.mxu0 %v914
    %934 = vmatpush.msra.mxu0 %v913
    %935 = vmatpush.msra.mxu0 %v912
    %936 = vmatpush.msra.mxu0 %v911
    %937 = vmatpush.msra.mxu0 %v910
    %938 = vmatpush.msra.mxu0 %v909
    %939 = vmatmul.f32.gmra.mxu0 %v921
    %v940 = vpop.f32.mrf.mxu0
    %v941 = vadd.f32 %v919, %v940
    %942 = vdwg.mxu0
    %vm943 = vcmask 122880
    %944 = vst.msk [vmem:[#allocation2] sm:$0x1] %vm943, %v941
    %v945 = vld [vmem:[%s13] sm:$0xff]
    %v946 = vld [vmem:[%s13 + $0x8] sm:$0xff]
    %v947 = vld [vmem:[%s13 + $0x10] sm:$0xff]
    %v948 = vld [vmem:[%s13 + $0x18] sm:$0xff]
    %v949 = vld [vmem:[%s13 + $0x20] sm:$0xff]
    %v950 = vld [vmem:[%s13 + $0x28] sm:$0xff]
    %v951 = vld [vmem:[%s13 + $0x30] sm:$0xff]
    %v952 = vld [vmem:[%s13 + $0x38] sm:$0xff]
    %v953 = vld [vmem:[%s13 + $0x40] sm:$0xff]
    %v954 = vld [vmem:[%s13 + $0x48] sm:$0xff]
    %v955 = vld [vmem:[%s2 + $0x10] sm:$0x1]
    %v956 = vperm.slane %v955, 0
    %v958 = vsel %vm898, %v896, 0
    %v961 = vsel %vm898, %v897, 0
    %963 = vmatpush.msra.mxu0 0.0
    %964 = vmatpush.msra.mxu0 0.0
    %965 = vmatpush.msra.mxu0 0.0
    %966 = vmatpush.msra.mxu0 0.0
    %967 = vmatpush.msra.mxu0 0.0
    %968 = vmatpush.msra.mxu0 0.0
    %969 = vmatpush.msra.mxu0 %v954
    %970 = vmatpush.msra.mxu0 %v953
    %971 = vmatpush.msra.mxu0 %v952
    %972 = vmatpush.msra.mxu0 %v951
    %973 = vmatpush.msra.mxu0 %v950
    %974 = vmatpush.msra.mxu0 %v949
    %975 = vmatpush.msra.mxu0 %v948
    %976 = vmatpush.msra.mxu0 %v947
    %977 = vmatpush.msra.mxu0 %v946
    %978 = vmatpush.msra.mxu0 %v945
    %979 = vmatmul.f32.gmra.mxu0 %v958
    %v980 = vpop.f32.mrf.mxu0
    %v981 = vadd.f32 %v956, %v980
    %982 = vmatmul.f32.gmra.mxu0 %v961
    %v983 = vpop.f32.mrf.mxu0
    %v984 = vadd.f32 %v956, %v983
    %985 = vdwg.mxu0
    %986 = vst.msk [vmem:[#allocation4] sm:$0xff] %vm62, %v981
    %987 = vst.msk [vmem:[#allocation4 + $0x8] sm:$0xff] %vm62, %v984
    // Predicated region
    $region58: #{tpu_custom_call.1} parent=1 // pred_check
      _
    $region59: #{tpu_custom_call.1} parent=1 // pred_check_branch
      %989 = sbr.rel (0) target = $region61
    $region60: #{tpu_custom_call.1} parent=1 // pred_region
      %991 = vsyncadd [#allocation3], 0
      %s993 = sshll.u32 [#allocation2], 4
      %s994 = int_to_ptr.vmem [resolvable:$true] %s993
      %s995 = sshll.u32 %s14, 4
      %s996 = int_to_ptr.hbm [resolvable:$true] %s995
      %998 = dma.vmem_to_hbm [thread:$0]  %s994, 16, %s996, [#allocation3]
    $region61: #{tpu_custom_call.1} parent=1 // pred_fallthru
      _
    // Predicated region
    $region62: #{tpu_custom_call.1} parent=1 // pred_check
      _
    $region63: #{tpu_custom_call.1} parent=1 // pred_check_branch
      %1000 = sbr.rel (0) target = $region65
    $region64: #{tpu_custom_call.1} parent=1 // pred_region
      %1002 = vsyncadd [#allocation5], 0
      %s1003 = sshll.u32 [#allocation4], 4
      %s1004 = int_to_ptr.vmem [resolvable:$true] %s1003
      %s1005 = sshll.u32 %s15, 4
      %s1006 = int_to_ptr.hbm [resolvable:$true] %s1005
      %1011 = dma.vmem_to_hbm [thread:$0]  %s1004, 256, %s1006, [#allocation5], 128, 128, 8
    $region65: #{tpu_custom_call.1} parent=1 // pred_fallthru
      _
    // Predicated region
    $region66: #{tpu_custom_call.1} parent=1 // pred_check
      _
    $region67: #{tpu_custom_call.1} parent=1 // pred_check_branch
      %1013 = sbr.rel (0) target = $region69
    $region68: #{tpu_custom_call.1} parent=1 // pred_region
      %1015 = dma.done [#allocation3], 16
    $region69: #{tpu_custom_call.1} parent=1 // pred_fallthru
      _
    // Predicated region
    $region70: #{tpu_custom_call.1} parent=1 // pred_check
      _
    $region71: #{tpu_custom_call.1} parent=1 // pred_check_branch
      %1017 = sbr.rel (0) target = $region73
    $region72: #{tpu_custom_call.1} parent=1 // pred_region
      %1019 = dma.done [#allocation5], 256
    $region73: #{tpu_custom_call.1} parent=1 // pred_fallthru
      _
    %1020 = vsyncpa [#allocation3], 1
    %1021 = vsyncpa [#allocation5], 1

</llo_original>
